<compile_context>
chip_gen: v7x
topology: tpu7x:2x2x1
jax: 0.10.0
libtpu: 0.0.40
codegen_flags: <defaults>
</compile_context>

<pallas_src>
import numpy as np
import jax
import jax.numpy as jnp
from jax.experimental import pallas as pl
from jax.experimental.pallas import tpu as pltpu

# ---- config (MelFeatCalculator defaults) ----
SAMPLERATE = 16000
N_FFT = 512
WIN_LENGTH = 400
HOP_LENGTH = 160
F_MIN = 20.0
F_MAX = 7600.0
N_MELS = 80
N_MELS_PAD = 128            # lane-dense mel width (extra columns are zero filters)
N_FREQS = 256               # Nyquist bin dropped (its mel filter row is all-zero)
PREEMPH = 0.97
FREQ_MASK_WIDTH = (0, 8)    # SpecAugmentor defaults (randint is exclusive-high,
TIME_MASK_WIDTH = (0, 10)   #  matching torch.randint in the reference)
FRAME_TILE_MAX = 1024       # frames per grid tile (multiple of 128)
TAIL_ROWS = 16              # extra hop rows fetched per tile for frame overlap


# ----------------------- parameter construction (glue) -----------------------
def _hamming_window_periodic(n):
    # torch.hamming_window(n) default: periodic=True, alpha=0.54, beta=0.46
    t = np.arange(n, dtype=np.float64)
    return 0.54 - 0.46 * np.cos(2.0 * np.pi * t / n)


def _mel_filterbank_padded():
    # torchaudio.functional.melscale_fbanks, mel_scale='htk', norm=None,
    # restricted to the first 256 freq bins (Nyquist row is exactly zero since
    # f_max=7600 < 8000) and zero-padded to 128 mel columns for lane density.
    def hz_to_mel(f):
        return 2595.0 * np.log10(1.0 + f / 700.0)

    def mel_to_hz(m):
        return 700.0 * (10.0 ** (m / 2595.0) - 1.0)

    n_freqs_full = N_FFT // 2 + 1
    all_freqs = np.linspace(0.0, SAMPLERATE / 2.0, n_freqs_full)
    m_pts = np.linspace(hz_to_mel(F_MIN), hz_to_mel(F_MAX), N_MELS + 2)
    f_pts = mel_to_hz(m_pts)
    f_diff = f_pts[1:] - f_pts[:-1]                       # (n_mels+1,)
    slopes = f_pts[None, :] - all_freqs[:, None]          # (n_freqs, n_mels+2)
    down = -slopes[:, :-2] / f_diff[:-1]
    up = slopes[:, 2:] / f_diff[1:]
    fb = np.maximum(0.0, np.minimum(down, up))            # (257, 80)
    fb = fb[:N_FREQS]                                     # exact: dropped row is zero
    out = np.zeros((N_FREQS, N_MELS_PAD), dtype=np.float32)
    out[:, :N_MELS] = fb
    return out


def _dft_matrix():
    # Windowed real DFT as a single (n_fft, 2*n_freqs) matrix [cos | -sin];
    # hamming window (zero-padded, centered to n_fft) folded in.
    win = _hamming_window_periodic(WIN_LENGTH)
    lpad = (N_FFT - WIN_LENGTH) // 2
    win_full = np.zeros(N_FFT, dtype=np.float64)
    win_full[lpad:lpad + WIN_LENGTH] = win
    n = np.arange(N_FFT, dtype=np.float64)[:, None]
    k = np.arange(N_FREQS, dtype=np.float64)[None, :]
    ang = 2.0 * np.pi * n * k / N_FFT
    cos_mat = np.cos(ang) * win_full[:, None]             # (n_fft, n_freqs)
    sin_mat = -np.sin(ang) * win_full[:, None]            # (n_fft, n_freqs)
    return np.concatenate([cos_mat, sin_mat], axis=1).astype(np.float32)  # (512, 512)


# ------------------------------- Pallas kernel -------------------------------
def _make_kernel(num_frames):
    def kernel(hop_ref, tail_ref, w_ref, fb_ref, out_ref, sum_ref):
        # ---- in-VMEM frame assembly from hop-strided rows (no HBM frames) ----
        main = hop_ref[0].astype(jnp.float32)              # (TF, 160)
        tail = tail_ref[0].astype(jnp.float32)              # (16, 160)
        tf = main.shape[0]
        rows = jnp.concatenate([main, tail], axis=0)         # (TF+16, 160)
        frames = jnp.concatenate(
            [rows[0:tf],                                      # samples [0, 160)
             rows[1:tf + 1],                                  # samples [160, 320)
             rows[2:tf + 2],                                  # samples [320, 480)
             rows[3:tf + 3, :N_FFT - 3 * HOP_LENGTH]],        # samples [480, 512)
            axis=-1).astype(jnp.bfloat16)                     # (TF, 512)

        # ---- one MXU matmul -> [Re | Im] of the windowed rDFT (f32 acc) ----
        y = jnp.dot(frames, w_ref[...], preferred_element_type=jnp.float32)  # (TF, 512)
        re = y[:, :N_FREQS]                                   # 128-lane aligned slices
        im = y[:, N_FREQS:]
        power = re * re + im * im                             # |X|^2 (power=2.0)
        mel = jnp.dot(power.astype(jnp.bfloat16), fb_ref[...],
                      preferred_element_type=jnp.float32)     # (TF, 128)
        logmel = jnp.log(mel + 1e-6)                          # (TF, 128)

        # ---- transposed lane-dense store: (mel, time) layout ----
        out_ref[0] = logmel.T                                 # (128, TF)

        # ---- masked per-tile time-sum (padding frames excluded) for mean ----
        row = (jax.lax.broadcasted_iota(jnp.int32, (tf, N_MELS_PAD), 0)
               + pl.program_id(1) * tf)
        psum = jnp.sum(jnp.where(row < num_frames, logmel, 0.0),
                       axis=0, keepdims=True)                 # (1, 128)
        sum_ref[0, 0] = jnp.broadcast_to(psum, (8, N_MELS_PAD))

    return kernel


# --------------------------------- wrapper -----------------------------------
def _round_up(x, m):
    return ((x + m - 1) // m) * m


def _cdiv(a, b):
    return (a + b - 1) // b


def mel_feat_calculator(audio, key):
    """audio: (batch, n_samples) float32 -> (batch, n_mels, num_frames) float32"""
    batch, n_samples = audio.shape

    # PreEmphasis: reflect-pad 1 on the left, conv1d with [-0.97, 1.0]
    prev = jnp.concatenate([audio[:, 1:2], audio[:, :-1]], axis=1)
    emph = audio - PREEMPH * prev

    # STFT framing (center=True, reflect pad n_fft//2)
    pad = N_FFT // 2
    padded = jnp.pad(emph, ((0, 0), (pad, pad)), mode="reflect")

    num_frames = 1 + n_samples // HOP_LENGTH

    # Frame-tile selection: multiple of 128 (lane-dense transposed store),
    # as large as possible, but with >= 2 grid cells when feasible (v7x 2 TCs).
    tile_f = min(FRAME_TILE_MAX, _round_up(num_frames, 128))
    if batch * _cdiv(num_frames, tile_f) < 2 and tile_f > 128:
        tile_f = max(128, _round_up(_cdiv(num_frames, 2), 128))
    f_pad = _round_up(num_frames, tile_f)
    num_tiles = f_pad // tile_f

    # Hop-strided layout: row r holds samples [r*hop, (r+1)*hop); frame f is
    # rows f..f+3 (last row only 32 samples). The kernel assembles frames, so
    # HBM only carries ~1.05x the audio (vs the old 3.2x-duplicated frames).
    need = (f_pad + TAIL_ROWS) * HOP_LENGTH
    padded = jnp.pad(padded, ((0, 0), (0, need - padded.shape[1])))
    hop = padded.astype(jnp.bfloat16).reshape(batch, f_pad + TAIL_ROWS, HOP_LENGTH)

    w_mat = jnp.asarray(_dft_matrix(), dtype=jnp.bfloat16)            # (512, 512)
    fb = jnp.asarray(_mel_filterbank_padded(), dtype=jnp.bfloat16)    # (256, 128)

    tail_blocks = tile_f // TAIL_ROWS

    logmel_t, tile_sums = pl.pallas_call(
        _make_kernel(num_frames),
        out_shape=(
            jax.ShapeDtypeStruct((batch, N_MELS_PAD, f_pad), jnp.float32),
            jax.ShapeDtypeStruct((batch, num_tiles, 8, N_MELS_PAD), jnp.float32),
        ),
        grid=(batch, num_tiles),
        in_specs=[
            # main hop rows of this tile: [t*TF, (t+1)*TF)
            pl.BlockSpec((1, tile_f, HOP_LENGTH), lambda b, t: (b, t, 0)),
            # 16 overlap rows starting at (t+1)*TF (same array, tiny extra DMA)
            pl.BlockSpec((1, TAIL_ROWS, HOP_LENGTH),
                         lambda b, t: (b, (t + 1) * tail_blocks, 0)),
            pl.BlockSpec((N_FFT, 2 * N_FREQS), lambda b, t: (0, 0)),
            pl.BlockSpec((N_FREQS, N_MELS_PAD), lambda b, t: (0, 0)),
        ],
        out_specs=(
            pl.BlockSpec((1, N_MELS_PAD, tile_f), lambda b, t: (b, 0, t)),
            pl.BlockSpec((1, 1, 8, N_MELS_PAD), lambda b, t: (b, t, 0, 0)),
        ),
        compiler_params=pltpu.CompilerParams(
            dimension_semantics=("parallel", "parallel"),
            vmem_limit_bytes=32 * 1024 * 1024,
        ),
    )(hop, hop, w_mat, fb)

    # Epilogue: single fused elementwise pass (mean from kernel sums, so the
    # feature tensor is read exactly once): crop padding, mean-over-time
    # normalization, SpecAugment masking. Already in (B, mel, time) layout.
    mean = tile_sums[:, :, 0, :N_MELS].sum(axis=1) / jnp.float32(num_frames)  # (B, 80)
    feat = logmel_t[:, :N_MELS, :num_frames]                                  # (B, 80, F)
    norm = feat - mean[:, :, None]

    # SpecAugment params (matches reference: pos upper bound uses batch-max len)
    k1, k2, k3, k4 = jax.random.split(key, 4)
    t_len = jax.random.randint(k1, (batch,), TIME_MASK_WIDTH[0], TIME_MASK_WIDTH[1])
    t_pos = jax.random.randint(
        k2, (batch,), 0, jnp.maximum(1, num_frames - jnp.max(t_len)))
    f_len = jax.random.randint(k3, (batch,), FREQ_MASK_WIDTH[0], FREQ_MASK_WIDTH[1])
    f_pos = jax.random.randint(
        k4, (batch,), 0, jnp.maximum(1, N_MELS - jnp.max(f_len)))

    mel_ids = jnp.arange(N_MELS)[None, :]                     # (1, 80)
    time_ids = jnp.arange(num_frames)[None, :]                # (1, F)
    fmask = (f_pos[:, None] <= mel_ids) & (mel_ids < (f_pos + f_len)[:, None])
    tmask = (t_pos[:, None] <= time_ids) & (time_ids < (t_pos + t_len)[:, None])
    mask = fmask[:, :, None] | tmask[:, None, :]              # (B, 80, F)

    return jnp.where(mask, 0.0, norm)                         # (B, n_mels, time)


if __name__ == "__main__":
    key = jax.random.PRNGKey(0)
    k_audio, k_aug = jax.random.split(key)
    batch, n_samples = 2, 1600                  # 0.1 s of 16 kHz audio -> 11 frames
    audio = jax.random.normal(k_audio, (batch, n_samples), dtype=jnp.float32)

    fn = jax.jit(mel_feat_calculator)
    feats = jax.block_until_ready(fn(audio, k_aug))
    num_frames = 1 + n_samples // HOP_LENGTH
    assert feats.shape == (batch, N_MELS, num_frames)
    assert feats.dtype == jnp.float32
    assert bool(jnp.all(jnp.isfinite(feats)))
    print("KERNEL_OK")
</pallas_src>

<mosaic_0001>
module attributes {stable_mosaic.version = 11 : i64} {
  func.func @kernel(%arg0: i32, %arg1: i32, %arg2: memref<1x128x160xbf16, #tpu.memory_space<vmem>>, %arg3: memref<1x16x160xbf16, #tpu.memory_space<vmem>>, %arg4: memref<512x512xbf16, #tpu.memory_space<vmem>>, %arg5: memref<256x128xbf16, #tpu.memory_space<vmem>>, %arg6: memref<1x128x128xf32, #tpu.memory_space<vmem>>, %arg7: memref<1x1x8x128xf32, #tpu.memory_space<vmem>>) attributes {dimension_semantics = [#tpu.dimension_semantics<parallel>, #tpu.dimension_semantics<parallel>], iteration_bounds = array<i64: 2, 1>, scalar_prefetch = 0 : i64, scratch_operands = 0 : i64, tpu.core_type = #tpu.core_type<tc>, window_params = [{transform_indices = @transform_0, window_bounds = array<i64: 1, 128, 160>}, {transform_indices = @transform_1, window_bounds = array<i64: 1, 16, 160>}, {pipeline_mode = #tpu.pipeline_mode<synchronous>, transform_indices = @transform_2, window_bounds = array<i64: 512, 512>}, {pipeline_mode = #tpu.pipeline_mode<synchronous>, transform_indices = @transform_3, window_bounds = array<i64: 256, 128>}, {transform_indices = @transform_4, window_bounds = array<i64: 1, 128, 128>}, {transform_indices = @transform_5, window_bounds = array<i64: 1, 1, 8, 128>}]} {
    %c0 = arith.constant 0 : index
    %c0_0 = arith.constant 0 : index
    %c0_1 = arith.constant 0 : index
    %0 = vector.load %arg2[%c0, %c0_0, %c0_1] : memref<1x128x160xbf16, #tpu.memory_space<vmem>>, vector<1x128x160xbf16>
    %1 = vector.shape_cast %0 : vector<1x128x160xbf16> to vector<128x160xbf16>
    %2 = arith.extf %1 : vector<128x160xbf16> to vector<128x160xf32>
    %c0_2 = arith.constant 0 : index
    %c0_3 = arith.constant 0 : index
    %c0_4 = arith.constant 0 : index
    %3 = vector.load %arg3[%c0_2, %c0_3, %c0_4] : memref<1x16x160xbf16, #tpu.memory_space<vmem>>, vector<1x16x160xbf16>
    %4 = vector.shape_cast %3 : vector<1x16x160xbf16> to vector<16x160xbf16>
    %5 = arith.extf %4 : vector<16x160xbf16> to vector<16x160xf32>
    %6 = tpu.concatenate %2, %5 in 0 : vector<128x160xf32>, vector<16x160xf32> -> vector<144x160xf32>
    %7 = vector.extract_strided_slice %6 {offsets = [0, 0], sizes = [128, 160], strides = [1, 1]} : vector<144x160xf32> to vector<128x160xf32>
    %8 = vector.extract_strided_slice %6 {offsets = [1, 0], sizes = [128, 160], strides = [1, 1]} : vector<144x160xf32> to vector<128x160xf32>
    %9 = vector.extract_strided_slice %6 {offsets = [2, 0], sizes = [128, 160], strides = [1, 1]} : vector<144x160xf32> to vector<128x160xf32>
    %10 = vector.extract_strided_slice %6 {offsets = [3, 0], sizes = [128, 32], strides = [1, 1]} : vector<144x160xf32> to vector<128x32xf32>
    %11 = tpu.concatenate %7, %8, %9, %10 in 1 : vector<128x160xf32>, vector<128x160xf32>, vector<128x160xf32>, vector<128x32xf32> -> vector<128x512xf32>
    %12 = arith.truncf %11 : vector<128x512xf32> to vector<128x512xbf16>
    %c0_5 = arith.constant 0 : index
    %c0_6 = arith.constant 0 : index
    %13 = vector.load %arg4[%c0_5, %c0_6] : memref<512x512xbf16, #tpu.memory_space<vmem>>, vector<512x512xbf16>
    %cst = arith.constant dense<0.000000e+00> : vector<128x512xf32>
    %14 = tpu.matmul %12, %13, %cst {dimension_numbers = #tpu.dot_dimension_numbers<[1], [0], [0], [1], [0, 0, 1, 1], [], []>} : vector<128x512xbf16>, vector<512x512xbf16>, vector<128x512xf32> -> vector<128x512xf32>
    %15 = vector.extract_strided_slice %14 {offsets = [0, 0], sizes = [128, 256], strides = [1, 1]} : vector<128x512xf32> to vector<128x256xf32>
    %16 = vector.extract_strided_slice %14 {offsets = [0, 256], sizes = [128, 256], strides = [1, 1]} : vector<128x512xf32> to vector<128x256xf32>
    %17 = arith.mulf %15, %15 : vector<128x256xf32>
    %18 = arith.mulf %16, %16 : vector<128x256xf32>
    %19 = arith.addf %17, %18 : vector<128x256xf32>
    %20 = arith.truncf %19 : vector<128x256xf32> to vector<128x256xbf16>
    %c0_7 = arith.constant 0 : index
    %c0_8 = arith.constant 0 : index
    %21 = vector.load %arg5[%c0_7, %c0_8] : memref<256x128xbf16, #tpu.memory_space<vmem>>, vector<256x128xbf16>
    %cst_9 = arith.constant dense<0.000000e+00> : vector<128x128xf32>
    %22 = tpu.matmul %20, %21, %cst_9 {dimension_numbers = #tpu.dot_dimension_numbers<[1], [0], [0], [1], [0, 0, 1, 1], [], []>} : vector<128x256xbf16>, vector<256x128xbf16>, vector<128x128xf32> -> vector<128x128xf32>
    %cst_10 = arith.constant 9.99999997E-7 : f32
    %23 = vector.broadcast %cst_10 : f32 to vector<128x128xf32>
    %24 = arith.addf %22, %23 : vector<128x128xf32>
    %25 = math.log %24 : vector<128x128xf32>
    %26 = tpu.transpose %25, [1, 0] : vector<128x128xf32> -> vector<128x128xf32>
    %c0_11 = arith.constant 0 : index
    %c0_12 = arith.constant 0 : index
    %c0_13 = arith.constant 0 : index
    %27 = vector.load %arg6[%c0_11, %c0_12, %c0_13] : memref<1x128x128xf32, #tpu.memory_space<vmem>>, vector<1x128x128xf32>
    %28 = vector.shape_cast %27 : vector<1x128x128xf32> to vector<128x128xf32>
    %29 = vector.shape_cast %26 : vector<128x128xf32> to vector<1x128x128xf32>
    tpu.vector_store %arg6[%c0_11, %c0_12, %c0_13], %29 {strides = array<i32>} : memref<1x128x128xf32, #tpu.memory_space<vmem>>, vector<1x128x128xf32>,
    %30 = tpu.iota {dimensions = array<i32: 0>} : vector<128x128xi32>
    %c128_i32 = arith.constant 128 : i32
    %31 = arith.muli %arg1, %c128_i32 : i32
    %32 = vector.broadcast %31 : i32 to vector<128x128xi32>
    %33 = arith.addi %30, %32 : vector<128x128xi32>
    %c11_i32 = arith.constant 11 : i32
    %34 = vector.broadcast %c11_i32 : i32 to vector<128x128xi32>
    %35 = arith.cmpi slt, %33, %34 : vector<128x128xi32>
    %cst_14 = arith.constant 0.000000e+00 : f32
    %36 = vector.broadcast %cst_14 : f32 to vector<128x128xf32>
    %37 = arith.select %35, %25, %36 : vector<128x128xi1>, vector<128x128xf32>
    %cst_15 = arith.constant dense<0.000000e+00> : vector<128xf32>
    %38 = vector.multi_reduction <add>, %37, %cst_15 [0] : vector<128x128xf32> to vector<128xf32>
    %39 = vector.shape_cast %38 : vector<128xf32> to vector<1x128xf32>
    %40 = vector.shape_cast %39 : vector<1x128xf32> to vector<1x128xf32>
    %41 = vector.broadcast %40 : vector<1x128xf32> to vector<8x128xf32>
    %c0_16 = arith.constant 0 : index
    %c0_17 = arith.constant 0 : index
    %c0_18 = arith.constant 0 : index
    %c0_19 = arith.constant 0 : index
    %42 = vector.load %arg7[%c0_16, %c0_17, %c0_18, %c0_19] : memref<1x1x8x128xf32, #tpu.memory_space<vmem>>, vector<1x1x8x128xf32>
    %43 = vector.shape_cast %42 : vector<1x1x8x128xf32> to vector<8x128xf32>
    %44 = vector.shape_cast %41 : vector<8x128xf32> to vector<1x1x8x128xf32>
    tpu.vector_store %arg7[%c0_16, %c0_17, %c0_18, %c0_19], %44 {strides = array<i32>} : memref<1x1x8x128xf32, #tpu.memory_space<vmem>>, vector<1x1x8x128xf32>,
    return
  }
  func.func @transform_0(%arg0: i32, %arg1: i32) -> (i32, i32, i32) {
    %c0_i32 = arith.constant 0 : i32
    %c0_i32_0 = arith.constant 0 : i32
    return %arg0, %arg1, %c0_i32 : i32, i32, i32
  }
  func.func @transform_1(%arg0: i32, %arg1: i32) -> (i32, i32, i32) {
    %c1_i32 = arith.constant 1 : i32
    %0 = arith.addi %arg1, %c1_i32 : i32
    %c8_i32 = arith.constant 8 : i32
    %1 = arith.muli %0, %c8_i32 : i32
    %c0_i32 = arith.constant 0 : i32
    %c0_i32_0 = arith.constant 0 : i32
    return %arg0, %1, %c0_i32 : i32, i32, i32
  }
  func.func @transform_2(%arg0: i32, %arg1: i32) -> (i32, i32) {
    %c0_i32 = arith.constant 0 : i32
    %c0_i32_0 = arith.constant 0 : i32
    %c0_i32_1 = arith.constant 0 : i32
    return %c0_i32, %c0_i32_0 : i32, i32
  }
  func.func @transform_3(%arg0: i32, %arg1: i32) -> (i32, i32) {
    %c0_i32 = arith.constant 0 : i32
    %c0_i32_0 = arith.constant 0 : i32
    %c0_i32_1 = arith.constant 0 : i32
    return %c0_i32, %c0_i32_0 : i32, i32
  }
  func.func @transform_4(%arg0: i32, %arg1: i32) -> (i32, i32, i32) {
    %c0_i32 = arith.constant 0 : i32
    %c0_i32_0 = arith.constant 0 : i32
    return %arg0, %c0_i32, %arg1 : i32, i32, i32
  }
  func.func @transform_5(%arg0: i32, %arg1: i32) -> (i32, i32, i32, i32) {
    %c0_i32 = arith.constant 0 : i32
    %c0_i32_0 = arith.constant 0 : i32
    %c0_i32_1 = arith.constant 0 : i32
    return %arg0, %arg1, %c0_i32, %c0_i32_0 : i32, i32, i32, i32
  }
}

</mosaic_0001>

<llo_original>
// kernel: mel_feat_calculator.3
$region0: #{mel_feat_calculator.3}
  #allocation0 [shape = 'u32[]', space=smem, size = 0x4, offset = 0x4, fixed_abs, tag = 'smem constant byte address 0x4 - core index']
  #allocation1 [shape = 'u32[144,128]{1,0:T(1,128)}', space=vmem, size = 0x12000, scoped, tag = 'internal scratch']
  %s0 = inlined_call_operand.vmem [shape: bf16[2,144,160], index: 0, kind: input, shape index: {}, may-alias: {0,1}]
  %s1 = inlined_call_operand.vmem [shape: bf16[2,144,160], index: 1, kind: input, shape index: {}, may-alias: {0,1}]
  %s2 = inlined_call_operand.vmem [shape: bf16[512,512], index: 2, kind: input, shape index: {}]
  %s3 = inlined_call_operand.vmem [shape: bf16[256,128], index: 3, kind: input, shape index: {}]
  %s4 = inlined_call_operand.vmem [shape: f32[2,128,128], index: 4, kind: output, shape index: {0}]
  %s5 = inlined_call_operand.vmem [shape: f32[2,1,8,128], index: 5, kind: output, shape index: {1}]
  %6 = xla_tuple %s4, %s5
  %s7 = sld [smem:[#allocation0]]
  $region57: #{mel_feat_calculator.3} parent=0
    _
  %s9 = ssub.s32 1, %s7
  %s10 = scalar_select 0, %s9, %s7
  loop: start=0, step=1, limit=4
  $region2: #{mel_feat_calculator.3} parent=0 // loop_pre_header
    _
  $region3: #{mel_feat_calculator.3} parent=0 // loop_header
    %s12 = sphi 0, %s16
    %p13 = scmp.ge.s32.totalorder %s12, 4
    %s19 = sphi 0, %s31
    %s20 = sphi 0, %s27
    %s21 = sphi 0, %s19
    %s22 = sphi 0, %s20
    %s23 = sphi 0, %s21
    %s24 = sphi 0, %s22
    %s36 = sphi 0, %s38
    %s39 = sphi 0, %s36
    %s40 = sphi 0, %s39
    %s56 = sphi 0, %s40
    %s68 = sphi 0, %s70
    %s71 = sphi 0, %s68
    %s72 = sphi 0, %s71
    %s88 = sphi 0, %s72
    %s92 = sphi 0, %s92
    %s94 = sphi 0, %s92
    %s95 = sphi 0, %s94
    %s109 = sphi 0, %s95
    %s113 = sphi 0, %s113
    %s115 = sphi 0, %s113
    %s116 = sphi 0, %s115
    %s130 = sphi 0, %s116
    %s138 = sphi 0, %s140
    %s141 = sphi 0, %s138
    %s142 = sphi 0, %s141
    %s158 = sphi 0, %s142
    %s166 = sphi 0, %s168
    %s169 = sphi 0, %s166
    %s170 = sphi 0, %s169
    %s186 = sphi 0, %s170
  $region4: #{mel_feat_calculator.3} parent=0 // loop_header_branch
    %15 = sbr.rel (%p13) target = $region8
  $region5: #{mel_feat_calculator.3} parent=0 // loop_body
    %s17 = ssub.s32 %s12, 1
    %s18 = ssub.s32 %s12, 2
    %s25 = sadd.s32 1, %s20
    %p26 = scmp.ge.s32.totalorder %s25, 1
    %s27 = scalar_select %p26, 0, %s25
    %s28 = sadd.s32 1, %s19
    %s29 = scalar_select %p26, %s28, %s19
    %p30 = scmp.ge.s32.totalorder %s29, 2
    %s31 = scalar_select %p30, 0, %s29
    %s32 = ssub.s32 %s19, %s31
    %s33 = ssub.s32 %s20, %s27
    %s34 = sor.u32 %s32, %s33
    %p35 = scmp.eq.s32.totalorder %s34, 0
    %s37 = sadd.s32 %s36, 1
    %s38 = scalar_select %p35, %s36, %s37
    %p41 = pneg %p35
    %p42 = scmp.eq.s32.totalorder %s12, 1
    %p43 = por %p41, %p42
    %p44 = scmp.ne.s32.totalorder %s36, %s39
    %p45 = scmp.eq.s32.totalorder %s12, 0
    %p46 = por %p44, %p45
    %p47 = scmp.ne.s32.totalorder %s36, %s39
    %p48 = scmp.eq.s32.totalorder %s17, 1
    %p49 = por %p47, %p48
    %p50 = scmp.ne.s32.totalorder %s39, %s40
    %p51 = scmp.eq.s32.totalorder %s17, 0
    %p52 = por %p50, %p51
    %p53 = scmp.ne.s32.totalorder %s39, %s40
    %p54 = scmp.eq.s32.totalorder %s18, 1
    %p55 = por %p53, %p54
    %p57 = scmp.ne.s32.totalorder %s40, %s56
    %p58 = scmp.eq.s32.totalorder %s18, 0
    %p59 = por %p57, %p58
    %s60 = sadd.s32 %s20, 1
    %s61 = smul.u32 %s60, 8
    %s62 = sadd.s32 %s27, 1
    %s63 = smul.u32 %s62, 8
    %s64 = ssub.s32 %s19, %s31
    %s65 = ssub.s32 %s61, %s63
    %s66 = sor.u32 %s64, %s65
    %p67 = scmp.eq.s32.totalorder %s66, 0
    %s69 = sadd.s32 %s68, 1
    %s70 = scalar_select %p67, %s68, %s69
    %p73 = pneg %p67
    %p74 = scmp.eq.s32.totalorder %s12, 1
    %p75 = por %p73, %p74
    %p76 = scmp.ne.s32.totalorder %s68, %s71
    %p77 = scmp.eq.s32.totalorder %s12, 0
    %p78 = por %p76, %p77
    %p79 = scmp.ne.s32.totalorder %s68, %s71
    %p80 = scmp.eq.s32.totalorder %s17, 1
    %p81 = por %p79, %p80
    %p82 = scmp.ne.s32.totalorder %s71, %s72
    %p83 = scmp.eq.s32.totalorder %s17, 0
    %p84 = por %p82, %p83
    %p85 = scmp.ne.s32.totalorder %s71, %s72
    %p86 = scmp.eq.s32.totalorder %s18, 1
    %p87 = por %p85, %p86
    %p89 = scmp.ne.s32.totalorder %s72, %s88
    %p90 = scmp.eq.s32.totalorder %s18, 0
    %p91 = por %p89, %p90
    %s93 = sadd.s32 %s92, 1
    %p96 = scmp.eq.s32.totalorder %s12, 1
    %p97 = scmp.ne.s32.totalorder %s92, %s94
    %p98 = scmp.eq.s32.totalorder %s12, 0
    %p99 = por %p97, %p98
    %p100 = scmp.ne.s32.totalorder %s92, %s94
    %p101 = scmp.eq.s32.totalorder %s17, 1
    %p102 = por %p100, %p101
    %p103 = scmp.ne.s32.totalorder %s94, %s95
    %p104 = scmp.eq.s32.totalorder %s17, 0
    %p105 = por %p103, %p104
    %p106 = scmp.ne.s32.totalorder %s94, %s95
    %p107 = scmp.eq.s32.totalorder %s18, 1
    %p108 = por %p106, %p107
    %p110 = scmp.ne.s32.totalorder %s95, %s109
    %p111 = scmp.eq.s32.totalorder %s18, 0
    %p112 = por %p110, %p111
    %s114 = sadd.s32 %s113, 1
    %p117 = scmp.eq.s32.totalorder %s12, 1
    %p118 = scmp.ne.s32.totalorder %s113, %s115
    %p119 = scmp.eq.s32.totalorder %s12, 0
    %p120 = por %p118, %p119
    %p121 = scmp.ne.s32.totalorder %s113, %s115
    %p122 = scmp.eq.s32.totalorder %s17, 1
    %p123 = por %p121, %p122
    %p124 = scmp.ne.s32.totalorder %s115, %s116
    %p125 = scmp.eq.s32.totalorder %s17, 0
    %p126 = por %p124, %p125
    %p127 = scmp.ne.s32.totalorder %s115, %s116
    %p128 = scmp.eq.s32.totalorder %s18, 1
    %p129 = por %p127, %p128
    %p131 = scmp.ne.s32.totalorder %s116, %s130
    %p132 = scmp.eq.s32.totalorder %s18, 0
    %p133 = por %p131, %p132
    %s134 = ssub.s32 %s19, %s31
    %s135 = ssub.s32 %s20, %s27
    %s136 = sor.u32 %s134, %s135
    %p137 = scmp.eq.s32.totalorder %s136, 0
    %s139 = sadd.s32 %s138, 1
    %s140 = scalar_select %p137, %s138, %s139
    %p143 = pneg %p137
    %p144 = scmp.eq.s32.totalorder %s12, 1
    %p145 = por %p143, %p144
    %p146 = scmp.ne.s32.totalorder %s138, %s141
    %p147 = scmp.eq.s32.totalorder %s12, 0
    %p148 = por %p146, %p147
    %p149 = scmp.ne.s32.totalorder %s138, %s141
    %p150 = scmp.eq.s32.totalorder %s17, 1
    %p151 = por %p149, %p150
    %p152 = scmp.ne.s32.totalorder %s141, %s142
    %p153 = scmp.eq.s32.totalorder %s17, 0
    %p154 = por %p152, %p153
    %p155 = scmp.ne.s32.totalorder %s141, %s142
    %p156 = scmp.eq.s32.totalorder %s18, 1
    %p157 = por %p155, %p156
    %p159 = scmp.ne.s32.totalorder %s142, %s158
    %p160 = scmp.eq.s32.totalorder %s18, 0
    %p161 = por %p159, %p160
    %s162 = ssub.s32 %s19, %s31
    %s163 = ssub.s32 %s20, %s27
    %s164 = sor.u32 %s162, %s163
    %p165 = scmp.eq.s32.totalorder %s164, 0
    %s167 = sadd.s32 %s166, 1
    %s168 = scalar_select %p165, %s166, %s167
    %p171 = pneg %p165
    %p172 = scmp.eq.s32.totalorder %s12, 1
    %p173 = por %p171, %p172
    %p174 = scmp.ne.s32.totalorder %s166, %s169
    %p175 = scmp.eq.s32.totalorder %s12, 0
    %p176 = por %p174, %p175
    %p177 = scmp.ne.s32.totalorder %s166, %s169
    %p178 = scmp.eq.s32.totalorder %s17, 1
    %p179 = por %p177, %p178
    %p180 = scmp.ne.s32.totalorder %s169, %s170
    %p181 = scmp.eq.s32.totalorder %s17, 0
    %p182 = por %p180, %p181
    %p183 = scmp.ne.s32.totalorder %s169, %s170
    %p184 = scmp.eq.s32.totalorder %s18, 1
    %p185 = por %p183, %p184
    %p187 = scmp.ne.s32.totalorder %s170, %s186
    %p188 = scmp.eq.s32.totalorder %s18, 0
    %p189 = por %p187, %p188
    %p190 = scmp.le.s32.totalorder 1, %s12
    %p191 = scmp.lt.s32.totalorder %s12, 3
    %p192 = pnand %p190, %p191
    %p193 = pneg %p192
    // Predicated region
    $region9: #{mel_feat_calculator.3} parent=5 // pred_check
      _
    $region10: #{mel_feat_calculator.3} parent=5 // pred_check_branch
      %195 = sbr.rel (%p192) target = $region12
    $region11: #{mel_feat_calculator.3} parent=5 // pred_region
      %s196 = ssub.s32 %s12, 1
      // Predicated region
      $region13: #{mel_feat_calculator.3} parent=11 // pred_check
        %p197 = pneg %p105
      $region14: #{mel_feat_calculator.3} parent=11 // pred_check_branch
        %199 = sbr.rel (%p197) target = $region16
      $region15: #{mel_feat_calculator.3} parent=11 // pred_region
        _
      $region16: #{mel_feat_calculator.3} parent=11 // pred_fallthru
        _
      // Predicated region
      $region17: #{mel_feat_calculator.3} parent=11 // pred_check
        %p200 = pneg %p126
      $region18: #{mel_feat_calculator.3} parent=11 // pred_check_branch
        %202 = sbr.rel (%p200) target = $region20
      $region19: #{mel_feat_calculator.3} parent=11 // pred_region
        _
      $region20: #{mel_feat_calculator.3} parent=11 // pred_fallthru
        _
    $region12: #{mel_feat_calculator.3} parent=5 // pred_fallthru
      _
    %p203 = scmp.lt.s32.totalorder %s12, 2
    // Predicated region
    $region21: #{mel_feat_calculator.3} parent=5 // pred_check
      %p204 = pneg %p203
    $region22: #{mel_feat_calculator.3} parent=5 // pred_check_branch
      %206 = sbr.rel (%p204) target = $region24
    $region23: #{mel_feat_calculator.3} parent=5 // pred_region
      // Predicated region
      $region25: #{mel_feat_calculator.3} parent=23 // pred_check
        %p207 = pneg %p46
      $region26: #{mel_feat_calculator.3} parent=23 // pred_check_branch
        %209 = sbr.rel (%p207) target = $region28
      $region27: #{mel_feat_calculator.3} parent=23 // pred_region
        %s210 = smul.u32 16, %s20
        %s211 = ssub.s32 18, %s210
        %p212 = scmp.lt.s32.totalorder %s211, 16
        %s213 = scalar_select %p212, %s211, 16
        %s214 = smul.u32 64, %s213
        %s215 = smul.u32 %s214, 2
        %p216 = scmp.lt.s32.totalorder %s19, 1
        %s217 = scalar_select %p216, %s19, 1
        %p218 = scmp.lt.s32.totalorder %s210, 17
        %s219 = scalar_select %p218, %s210, 17
        %s220 = smul.addr %s219, 2
        %s221 = smul.addr %s217, 36
        %s222 = sadd.s32 %s220, %s221
        %s223 = smul.addr %s222, 4
        %s224 = scalar_lea.vmem %s0, %s223
        %s225 = smul.u32 16, %s20
        %s226 = ssub.s32 18, %s225
        %p227 = scmp.lt.s32.totalorder %s226, 16
        %s228 = scalar_select %p227, %s226, 16
        %s229 = smul.u32 64, %s228
        %s230 = smul.u32 %s229, 2
      $region28: #{mel_feat_calculator.3} parent=23 // pred_fallthru
        _
      // Predicated region
      $region29: #{mel_feat_calculator.3} parent=23 // pred_check
        %p231 = pneg %p78
      $region30: #{mel_feat_calculator.3} parent=23 // pred_check_branch
        %233 = sbr.rel (%p231) target = $region32
      $region31: #{mel_feat_calculator.3} parent=23 // pred_region
        %s234 = sadd.s32 %s20, 1
        %s235 = smul.u32 %s234, 8
        %s236 = smul.u32 2, %s235
        %p237 = scmp.lt.s32.totalorder %s19, 1
        %s238 = scalar_select %p237, %s19, 1
        %p239 = scmp.lt.s32.totalorder %s236, 17
        %s240 = scalar_select %p239, %s236, 17
        %s241 = smul.addr %s240, 2
        %s242 = smul.addr %s238, 36
        %s243 = sadd.s32 %s241, %s242
        %s244 = smul.addr %s243, 4
        %s245 = scalar_lea.vmem %s1, %s244
        %s246 = sadd.s32 %s20, 1
        %s247 = smul.u32 %s246, 8
        %s248 = smul.u32 2, %s247
      $region32: #{mel_feat_calculator.3} parent=23 // pred_fallthru
        _
    $region24: #{mel_feat_calculator.3} parent=5 // pred_fallthru
      _
    %p249 = scmp.le.s32.totalorder 1, %s12
    %p250 = scmp.lt.s32.totalorder %s12, 3
    %p251 = pnand %p249, %p250
    %p252 = pneg %p251
    // Predicated region
    $region33: #{mel_feat_calculator.3} parent=5 // pred_check
      _
    $region34: #{mel_feat_calculator.3} parent=5 // pred_check_branch
      %254 = sbr.rel (%p251) target = $region36
    $region35: #{mel_feat_calculator.3} parent=5 // pred_region
      %s255 = ssub.s32 %s12, 1
      %s256 = smul.u32 16, %s22
      %s257 = ssub.s32 18, %s256
      %p258 = scmp.lt.s32.totalorder %s257, 16
      %s259 = scalar_select %p258, %s257, 16
      %s260 = smul.u32 64, %s259
      %s261 = smul.u32 %s260, 2
      %p262 = scmp.lt.s32.totalorder %s21, 1
      %s263 = scalar_select %p262, %s21, 1
      %p264 = scmp.lt.s32.totalorder %s256, 17
      %s265 = scalar_select %p264, %s256, 17
      %s266 = smul.addr %s265, 2
      %s267 = smul.addr %s263, 36
      %s268 = sadd.s32 %s266, %s267
      %s269 = smul.addr %s268, 4
      %s270 = scalar_lea.vmem %s0, %s269
      %p271 = pneg %p52
      %p272 = pneg %p49
      %s273 = sadd.s32 %s22, 1
      %s274 = smul.u32 %s273, 8
      %s275 = smul.u32 2, %s274
      %p276 = scmp.lt.s32.totalorder %s21, 1
      %s277 = scalar_select %p276, %s21, 1
      %p278 = scmp.lt.s32.totalorder %s275, 17
      %s279 = scalar_select %p278, %s275, 17
      %s280 = smul.addr %s279, 2
      %s281 = smul.addr %s277, 36
      %s282 = sadd.s32 %s280, %s281
      %s283 = smul.addr %s282, 4
      %s284 = scalar_lea.vmem %s1, %s283
      %p285 = pneg %p84
      %p286 = pneg %p81
      %p287 = pneg %p105
      %p288 = pneg %p102
      %p289 = pneg %p126
      %p290 = pneg %p123
      %p291 = pneg %p154
      %p292 = pneg %p151
      %p293 = scmp.lt.s32.totalorder %s21, 1
      %s294 = scalar_select %p293, %s21, 1
      %p295 = scmp.lt.s32.totalorder %s22, 0
      %s296 = scalar_select %p295, %s22, 0
      %s297 = smul.addr %s294, 16
      %s298 = sadd.s32 %s296, %s297
      %s299 = smul.addr %s298, 8
      %s300 = scalar_lea.vmem %s4, %s299
      %p301 = pneg %p182
      %p302 = pneg %p179
      %p303 = scmp.lt.s32.totalorder %s21, 1
      %s304 = scalar_select %p303, %s21, 1
      %p305 = scmp.lt.s32.totalorder %s22, 0
      %s306 = scalar_select %p305, %s22, 0
      %s307 = sadd.s32 %s306, %s304
      %s308 = smul.addr %s307, 8
      %s309 = scalar_lea.vmem %s5, %s308
      %s310 = smul.u32 16, %s22
      %s311 = ssub.s32 18, %s310
      %p312 = scmp.lt.s32.totalorder %s311, 16
      %s313 = scalar_select %p312, %s311, 16
      %s314 = smul.u32 64, %s313
      %s315 = smul.u32 %s314, 2
      %p316 = scmp.lt.s32.totalorder %s21, 1
      %s317 = scalar_select %p316, %s21, 1
      %p318 = scmp.lt.s32.totalorder %s310, 17
      %s319 = scalar_select %p318, %s310, 17
      %s320 = smul.addr %s319, 2
      %s321 = smul.addr %s317, 36
      %s322 = sadd.s32 %s320, %s321
      %s323 = smul.addr %s322, 4
      %s324 = scalar_lea.vmem %s0, %s323
      %s325 = smul.u32 16, %s22
      %s326 = ssub.s32 18, %s325
      %p327 = scmp.lt.s32.totalorder %s326, 16
      %s328 = scalar_select %p327, %s326, 16
      %s329 = smul.u32 64, %s328
      %s330 = smul.u32 %s329, 2
      %s331 = sadd.s32 %s22, 1
      %s332 = smul.u32 %s331, 8
      %s333 = smul.u32 2, %s332
      %p334 = scmp.lt.s32.totalorder %s21, 1
      %s335 = scalar_select %p334, %s21, 1
      %p336 = scmp.lt.s32.totalorder %s333, 17
      %s337 = scalar_select %p336, %s333, 17
      %s338 = smul.addr %s337, 2
      %s339 = smul.addr %s335, 36
      %s340 = sadd.s32 %s338, %s339
      %s341 = smul.addr %s340, 4
      %s342 = scalar_lea.vmem %s1, %s341
      %s343 = sadd.s32 %s22, 1
      %s344 = smul.u32 %s343, 8
      %s345 = smul.u32 2, %s344
      %p346 = scmp.lt.s32.totalorder %s21, 1
      %s347 = scalar_select %p346, %s21, 1
      %p348 = scmp.lt.s32.totalorder %s22, 0
      %s349 = scalar_select %p348, %s22, 0
      %s350 = smul.addr %s347, 16
      %s351 = sadd.s32 %s349, %s350
      %s352 = smul.addr %s351, 8
      %s353 = scalar_lea.vmem %s4, %s352
      %p354 = scmp.lt.s32.totalorder %s21, 1
      %s355 = scalar_select %p354, %s21, 1
      %p356 = scmp.lt.s32.totalorder %s22, 0
      %s357 = scalar_select %p356, %s22, 0
      %s358 = sadd.s32 %s357, %s355
      %s359 = smul.addr %s358, 8
      %s360 = scalar_lea.vmem %s5, %s359
      %v362 = vld [vmem:[%s324] sm:$0xff]
      %v363 = vld [vmem:[%s324 + $0x8] sm:$0xff]
      %v364 = vld [vmem:[%s324 + $0x10] sm:$0xff]
      %v365 = vld [vmem:[%s324 + $0x18] sm:$0xff]
      %v366 = vld [vmem:[%s324 + $0x20] sm:$0xff]
      %v367 = vld [vmem:[%s324 + $0x28] sm:$0xff]
      %v368 = vld [vmem:[%s324 + $0x30] sm:$0xff]
      %v369 = vld [vmem:[%s324 + $0x38] sm:$0xff]
      %v370 = vld [vmem:[%s324 + $0x40] sm:$0xff]
      %v371 = vld [vmem:[%s324 + $0x48] sm:$0xff]
      %v372 = vld [vmem:[%s324 + $0x50] sm:$0xff]
      %v373 = vld [vmem:[%s324 + $0x58] sm:$0xff]
      %v374 = vld [vmem:[%s324 + $0x60] sm:$0xff]
      %v375 = vld [vmem:[%s324 + $0x68] sm:$0xff]
      %v376 = vld [vmem:[%s324 + $0x70] sm:$0xff]
      %v377 = vld [vmem:[%s324 + $0x78] sm:$0xff]
      %v378 = vunpack.c.l.bf16 %v362
      %v379 = vunpack.c.h.bf16 %v362
      %v380 = vunpack.c.l.bf16 %v363
      %v381 = vunpack.c.h.bf16 %v363
      %v382 = vunpack.c.l.bf16 %v364
      %v383 = vunpack.c.h.bf16 %v364
      %v384 = vunpack.c.l.bf16 %v365
      %v385 = vunpack.c.h.bf16 %v365
      %v386 = vunpack.c.l.bf16 %v366
      %v387 = vunpack.c.h.bf16 %v366
      %v388 = vunpack.c.l.bf16 %v367
      %v389 = vunpack.c.h.bf16 %v367
      %v390 = vunpack.c.l.bf16 %v368
      %v391 = vunpack.c.h.bf16 %v368
      %v392 = vunpack.c.l.bf16 %v369
      %v393 = vunpack.c.h.bf16 %v369
      %v394 = vunpack.c.l.bf16 %v370
      %v395 = vunpack.c.h.bf16 %v370
      %v396 = vunpack.c.l.bf16 %v371
      %v397 = vunpack.c.h.bf16 %v371
      %v398 = vunpack.c.l.bf16 %v372
      %v399 = vunpack.c.h.bf16 %v372
      %v400 = vunpack.c.l.bf16 %v373
      %v401 = vunpack.c.h.bf16 %v373
      %v402 = vunpack.c.l.bf16 %v374
      %v403 = vunpack.c.h.bf16 %v374
      %v404 = vunpack.c.l.bf16 %v375
      %v405 = vunpack.c.h.bf16 %v375
      %v406 = vunpack.c.l.bf16 %v376
      %v407 = vunpack.c.h.bf16 %v376
      %v408 = vunpack.c.l.bf16 %v377
      %v409 = vunpack.c.h.bf16 %v377
      %v410 = vld [vmem:[%s342] sm:$0xff]
      %v411 = vunpack.c.l.bf16 %v410
      %v412 = vunpack.c.h.bf16 %v410
      %vm447 = vcmask 1046528
      %v448 = vrot.slane %v378, 1
      %v449 = vrot.slane %v380, 1
      %v450 = vsel %vm447, %v448, %v449
      %v451 = vrot.slane %v379, 1
      %v452 = vrot.slane %v381, 1
      %v453 = vsel %vm447, %v451, %v452
      %v454 = vrot.slane %v382, 1
      %v455 = vsel %vm447, %v449, %v454
      %v456 = vrot.slane %v383, 1
      %v457 = vsel %vm447, %v452, %v456
      %v458 = vrot.slane %v384, 1
      %v459 = vsel %vm447, %v454, %v458
      %v460 = vrot.slane %v385, 1
      %v461 = vsel %vm447, %v456, %v460
      %v462 = vrot.slane %v386, 1
      %v463 = vsel %vm447, %v458, %v462
      %v464 = vrot.slane %v387, 1
      %v465 = vsel %vm447, %v460, %v464
      %v466 = vrot.slane %v388, 1
      %v467 = vsel %vm447, %v462, %v466
      %v468 = vrot.slane %v389, 1
      %v469 = vsel %vm447, %v464, %v468
      %v470 = vrot.slane %v390, 1
      %v471 = vsel %vm447, %v466, %v470
      %v472 = vrot.slane %v391, 1
      %v473 = vsel %vm447, %v468, %v472
      %v474 = vrot.slane %v392, 1
      %v475 = vsel %vm447, %v470, %v474
      %v476 = vrot.slane %v393, 1
      %v477 = vsel %vm447, %v472, %v476
      %v478 = vrot.slane %v394, 1
      %v479 = vsel %vm447, %v474, %v478
      %v480 = vrot.slane %v395, 1
      %v481 = vsel %vm447, %v476, %v480
      %v482 = vrot.slane %v396, 1
      %v483 = vsel %vm447, %v478, %v482
      %v484 = vrot.slane %v397, 1
      %v485 = vsel %vm447, %v480, %v484
      %v486 = vrot.slane %v398, 1
      %v487 = vsel %vm447, %v482, %v486
      %v488 = vrot.slane %v399, 1
      %v489 = vsel %vm447, %v484, %v488
      %v490 = vrot.slane %v400, 1
      %v491 = vsel %vm447, %v486, %v490
      %v492 = vrot.slane %v401, 1
      %v493 = vsel %vm447, %v488, %v492
      %v494 = vrot.slane %v402, 1
      %v495 = vsel %vm447, %v490, %v494
      %v496 = vrot.slane %v403, 1
      %v497 = vsel %vm447, %v492, %v496
      %v498 = vrot.slane %v404, 1
      %v499 = vsel %vm447, %v494, %v498
      %v500 = vrot.slane %v405, 1
      %v501 = vsel %vm447, %v496, %v500
      %v502 = vrot.slane %v406, 1
      %v503 = vsel %vm447, %v498, %v502
      %v504 = vrot.slane %v407, 1
      %v505 = vsel %vm447, %v500, %v504
      %v506 = vrot.slane %v408, 1
      %v507 = vsel %vm447, %v502, %v506
      %v508 = vrot.slane %v409, 1
      %v509 = vsel %vm447, %v504, %v508
      %v510 = vrot.slane %v411, 1
      %v511 = vsel %vm447, %v506, %v510
      %v512 = vrot.slane %v412, 1
      %v513 = vsel %vm447, %v508, %v512
      %514 = vrot.lane.b32.xlu0 %v450, 32
      %v515 = vpop.permute.xlu0 %514
      %516 = vrot.lane.b32.xlu0 %v453, 32
      %v517 = vpop.permute.xlu0 %516
      %518 = vrot.lane.b32.xlu0 %v455, 32
      %v519 = vpop.permute.xlu0 %518
      %520 = vrot.lane.b32.xlu0 %v457, 32
      %v521 = vpop.permute.xlu0 %520
      %522 = vrot.lane.b32.xlu0 %v459, 32
      %v523 = vpop.permute.xlu0 %522
      %524 = vrot.lane.b32.xlu0 %v461, 32
      %v525 = vpop.permute.xlu0 %524
      %526 = vrot.lane.b32.xlu0 %v463, 32
      %v527 = vpop.permute.xlu0 %526
      %528 = vrot.lane.b32.xlu0 %v465, 32
      %v529 = vpop.permute.xlu0 %528
      %530 = vrot.lane.b32.xlu0 %v467, 32
      %v531 = vpop.permute.xlu0 %530
      %532 = vrot.lane.b32.xlu0 %v469, 32
      %v533 = vpop.permute.xlu0 %532
      %534 = vrot.lane.b32.xlu0 %v471, 32
      %v535 = vpop.permute.xlu0 %534
      %536 = vrot.lane.b32.xlu0 %v473, 32
      %v537 = vpop.permute.xlu0 %536
      %538 = vrot.lane.b32.xlu0 %v475, 32
      %v539 = vpop.permute.xlu0 %538
      %540 = vrot.lane.b32.xlu0 %v477, 32
      %v541 = vpop.permute.xlu0 %540
      %542 = vrot.lane.b32.xlu0 %v479, 32
      %v543 = vpop.permute.xlu0 %542
      %544 = vrot.lane.b32.xlu0 %v481, 32
      %v545 = vpop.permute.xlu0 %544
      %546 = vrot.lane.b32.xlu0 %v483, 32
      %v547 = vpop.permute.xlu0 %546
      %548 = vrot.lane.b32.xlu0 %v485, 32
      %v549 = vpop.permute.xlu0 %548
      %550 = vrot.lane.b32.xlu0 %v487, 32
      %v551 = vpop.permute.xlu0 %550
      %552 = vrot.lane.b32.xlu0 %v489, 32
      %v553 = vpop.permute.xlu0 %552
      %554 = vrot.lane.b32.xlu0 %v491, 32
      %v555 = vpop.permute.xlu0 %554
      %556 = vrot.lane.b32.xlu0 %v493, 32
      %v557 = vpop.permute.xlu0 %556
      %558 = vrot.lane.b32.xlu0 %v495, 32
      %v559 = vpop.permute.xlu0 %558
      %560 = vrot.lane.b32.xlu0 %v497, 32
      %v561 = vpop.permute.xlu0 %560
      %562 = vrot.lane.b32.xlu0 %v499, 32
      %v563 = vpop.permute.xlu0 %562
      %564 = vrot.lane.b32.xlu0 %v501, 32
      %v565 = vpop.permute.xlu0 %564
      %566 = vrot.lane.b32.xlu0 %v503, 32
      %v567 = vpop.permute.xlu0 %566
      %568 = vrot.lane.b32.xlu0 %v505, 32
      %v569 = vpop.permute.xlu0 %568
      %570 = vrot.lane.b32.xlu0 %v507, 32
      %v571 = vpop.permute.xlu0 %570
      %572 = vrot.lane.b32.xlu0 %v509, 32
      %v573 = vpop.permute.xlu0 %572
      %574 = vrot.lane.b32.xlu0 %v511, 32
      %v575 = vpop.permute.xlu0 %574
      %576 = vrot.lane.b32.xlu0 %v513, 32
      %v577 = vpop.permute.xlu0 %576
      %vm578 = vcmask 261120
      %v579 = vsel %vm578, %v515, %v517
      %v580 = vsel %vm578, %v519, %v521
      %v581 = vsel %vm578, %v523, %v525
      %v582 = vsel %vm578, %v527, %v529
      %v583 = vsel %vm578, %v531, %v533
      %v584 = vsel %vm578, %v535, %v537
      %v585 = vsel %vm578, %v539, %v541
      %v586 = vsel %vm578, %v543, %v545
      %v587 = vsel %vm578, %v547, %v549
      %v588 = vsel %vm578, %v551, %v553
      %v589 = vsel %vm578, %v555, %v557
      %v590 = vsel %vm578, %v559, %v561
      %v591 = vsel %vm578, %v563, %v565
      %v592 = vsel %vm578, %v567, %v569
      %v593 = vsel %vm578, %v571, %v573
      %v594 = vsel %vm578, %v575, %v577
      %vm627 = vcmask 1045504
      %v628 = vrot.slane %v378, 2
      %v629 = vrot.slane %v380, 2
      %v630 = vsel %vm627, %v628, %v629
      %v631 = vrot.slane %v379, 2
      %v632 = vrot.slane %v381, 2
      %v633 = vsel %vm627, %v631, %v632
      %v634 = vrot.slane %v382, 2
      %v635 = vsel %vm627, %v629, %v634
      %v636 = vrot.slane %v383, 2
      %v637 = vsel %vm627, %v632, %v636
      %v638 = vrot.slane %v384, 2
      %v639 = vsel %vm627, %v634, %v638
      %v640 = vrot.slane %v385, 2
      %v641 = vsel %vm627, %v636, %v640
      %v642 = vrot.slane %v386, 2
      %v643 = vsel %vm627, %v638, %v642
      %v644 = vrot.slane %v387, 2
      %v645 = vsel %vm627, %v640, %v644
      %v646 = vrot.slane %v388, 2
      %v647 = vsel %vm627, %v642, %v646
      %v648 = vrot.slane %v389, 2
      %v649 = vsel %vm627, %v644, %v648
      %v650 = vrot.slane %v390, 2
      %v651 = vsel %vm627, %v646, %v650
      %v652 = vrot.slane %v391, 2
      %v653 = vsel %vm627, %v648, %v652
      %v654 = vrot.slane %v392, 2
      %v655 = vsel %vm627, %v650, %v654
      %v656 = vrot.slane %v393, 2
      %v657 = vsel %vm627, %v652, %v656
      %v658 = vrot.slane %v394, 2
      %v659 = vsel %vm627, %v654, %v658
      %v660 = vrot.slane %v395, 2
      %v661 = vsel %vm627, %v656, %v660
      %v662 = vrot.slane %v396, 2
      %v663 = vsel %vm627, %v658, %v662
      %v664 = vrot.slane %v397, 2
      %v665 = vsel %vm627, %v660, %v664
      %v666 = vrot.slane %v398, 2
      %v667 = vsel %vm627, %v662, %v666
      %v668 = vrot.slane %v399, 2
      %v669 = vsel %vm627, %v664, %v668
      %v670 = vrot.slane %v400, 2
      %v671 = vsel %vm627, %v666, %v670
      %v672 = vrot.slane %v401, 2
      %v673 = vsel %vm627, %v668, %v672
      %v674 = vrot.slane %v402, 2
      %v675 = vsel %vm627, %v670, %v674
      %v676 = vrot.slane %v403, 2
      %v677 = vsel %vm627, %v672, %v676
      %v678 = vrot.slane %v404, 2
      %v679 = vsel %vm627, %v674, %v678
      %v680 = vrot.slane %v405, 2
      %v681 = vsel %vm627, %v676, %v680
      %v682 = vrot.slane %v406, 2
      %v683 = vsel %vm627, %v678, %v682
      %v684 = vrot.slane %v407, 2
      %v685 = vsel %vm627, %v680, %v684
      %v686 = vrot.slane %v408, 2
      %v687 = vsel %vm627, %v682, %v686
      %v688 = vrot.slane %v409, 2
      %v689 = vsel %vm627, %v684, %v688
      %v690 = vrot.slane %v411, 2
      %v691 = vsel %vm627, %v686, %v690
      %v692 = vrot.slane %v412, 2
      %v693 = vsel %vm627, %v688, %v692
      %694 = vrot.lane.b32.xlu0 %v630, 64
      %v695 = vpop.permute.xlu0 %694
      %696 = vrot.lane.b32.xlu0 %v633, 64
      %v697 = vpop.permute.xlu0 %696
      %698 = vrot.lane.b32.xlu0 %v635, 64
      %v699 = vpop.permute.xlu0 %698
      %700 = vrot.lane.b32.xlu0 %v637, 64
      %v701 = vpop.permute.xlu0 %700
      %702 = vrot.lane.b32.xlu0 %v639, 64
      %v703 = vpop.permute.xlu0 %702
      %704 = vrot.lane.b32.xlu0 %v641, 64
      %v705 = vpop.permute.xlu0 %704
      %706 = vrot.lane.b32.xlu0 %v643, 64
      %v707 = vpop.permute.xlu0 %706
      %708 = vrot.lane.b32.xlu0 %v645, 64
      %v709 = vpop.permute.xlu0 %708
      %710 = vrot.lane.b32.xlu0 %v647, 64
      %v711 = vpop.permute.xlu0 %710
      %712 = vrot.lane.b32.xlu0 %v649, 64
      %v713 = vpop.permute.xlu0 %712
      %714 = vrot.lane.b32.xlu0 %v651, 64
      %v715 = vpop.permute.xlu0 %714
      %716 = vrot.lane.b32.xlu0 %v653, 64
      %v717 = vpop.permute.xlu0 %716
      %718 = vrot.lane.b32.xlu0 %v655, 64
      %v719 = vpop.permute.xlu0 %718
      %720 = vrot.lane.b32.xlu0 %v657, 64
      %v721 = vpop.permute.xlu0 %720
      %722 = vrot.lane.b32.xlu0 %v659, 64
      %v723 = vpop.permute.xlu0 %722
      %724 = vrot.lane.b32.xlu0 %v661, 64
      %v725 = vpop.permute.xlu0 %724
      %726 = vrot.lane.b32.xlu0 %v663, 64
      %v727 = vpop.permute.xlu0 %726
      %728 = vrot.lane.b32.xlu0 %v665, 64
      %v729 = vpop.permute.xlu0 %728
      %730 = vrot.lane.b32.xlu0 %v667, 64
      %v731 = vpop.permute.xlu0 %730
      %732 = vrot.lane.b32.xlu0 %v669, 64
      %v733 = vpop.permute.xlu0 %732
      %734 = vrot.lane.b32.xlu0 %v671, 64
      %v735 = vpop.permute.xlu0 %734
      %736 = vrot.lane.b32.xlu0 %v673, 64
      %v737 = vpop.permute.xlu0 %736
      %738 = vrot.lane.b32.xlu0 %v675, 64
      %v739 = vpop.permute.xlu0 %738
      %740 = vrot.lane.b32.xlu0 %v677, 64
      %v741 = vpop.permute.xlu0 %740
      %742 = vrot.lane.b32.xlu0 %v679, 64
      %v743 = vpop.permute.xlu0 %742
      %744 = vrot.lane.b32.xlu0 %v681, 64
      %v745 = vpop.permute.xlu0 %744
      %746 = vrot.lane.b32.xlu0 %v683, 64
      %v747 = vpop.permute.xlu0 %746
      %748 = vrot.lane.b32.xlu0 %v685, 64
      %v749 = vpop.permute.xlu0 %748
      %750 = vrot.lane.b32.xlu0 %v687, 64
      %v751 = vpop.permute.xlu0 %750
      %752 = vrot.lane.b32.xlu0 %v689, 64
      %v753 = vpop.permute.xlu0 %752
      %754 = vrot.lane.b32.xlu0 %v691, 64
      %v755 = vpop.permute.xlu0 %754
      %756 = vrot.lane.b32.xlu0 %v693, 64
      %v757 = vpop.permute.xlu0 %756
      %vm758 = vcmask 523264
      %v759 = vsel %vm758, %v695, %v697
      %v760 = vsel %vm758, %v699, %v701
      %v761 = vsel %vm758, %v703, %v705
      %v762 = vsel %vm758, %v707, %v709
      %v763 = vsel %vm758, %v711, %v713
      %v764 = vsel %vm758, %v715, %v717
      %v765 = vsel %vm758, %v719, %v721
      %v766 = vsel %vm758, %v723, %v725
      %v767 = vsel %vm758, %v727, %v729
      %v768 = vsel %vm758, %v731, %v733
      %v769 = vsel %vm758, %v735, %v737
      %v770 = vsel %vm758, %v739, %v741
      %v771 = vsel %vm758, %v743, %v745
      %v772 = vsel %vm758, %v747, %v749
      %v773 = vsel %vm758, %v751, %v753
      %v774 = vsel %vm758, %v755, %v757
      %vm807 = vcmask 1044480
      %v808 = vrot.slane %v378, 3
      %v809 = vrot.slane %v380, 3
      %v810 = vsel %vm807, %v808, %v809
      %v811 = vrot.slane %v382, 3
      %v812 = vsel %vm807, %v809, %v811
      %v813 = vrot.slane %v384, 3
      %v814 = vsel %vm807, %v811, %v813
      %v815 = vrot.slane %v386, 3
      %v816 = vsel %vm807, %v813, %v815
      %v817 = vrot.slane %v388, 3
      %v818 = vsel %vm807, %v815, %v817
      %v819 = vrot.slane %v390, 3
      %v820 = vsel %vm807, %v817, %v819
      %v821 = vrot.slane %v392, 3
      %v822 = vsel %vm807, %v819, %v821
      %v823 = vrot.slane %v394, 3
      %v824 = vsel %vm807, %v821, %v823
      %v825 = vrot.slane %v396, 3
      %v826 = vsel %vm807, %v823, %v825
      %v827 = vrot.slane %v398, 3
      %v828 = vsel %vm807, %v825, %v827
      %v829 = vrot.slane %v400, 3
      %v830 = vsel %vm807, %v827, %v829
      %v831 = vrot.slane %v402, 3
      %v832 = vsel %vm807, %v829, %v831
      %v833 = vrot.slane %v404, 3
      %v834 = vsel %vm807, %v831, %v833
      %v835 = vrot.slane %v406, 3
      %v836 = vsel %vm807, %v833, %v835
      %v837 = vrot.slane %v408, 3
      %v838 = vsel %vm807, %v835, %v837
      %v839 = vrot.slane %v411, 3
      %v840 = vsel %vm807, %v837, %v839
      %841 = vrot.lane.b32.xlu0 %v810, 96
      %v842 = vpop.permute.xlu0 %841
      %843 = vrot.lane.b32.xlu0 %v812, 96
      %v844 = vpop.permute.xlu0 %843
      %845 = vrot.lane.b32.xlu0 %v814, 96
      %v846 = vpop.permute.xlu0 %845
      %847 = vrot.lane.b32.xlu0 %v816, 96
      %v848 = vpop.permute.xlu0 %847
      %849 = vrot.lane.b32.xlu0 %v818, 96
      %v850 = vpop.permute.xlu0 %849
      %851 = vrot.lane.b32.xlu0 %v820, 96
      %v852 = vpop.permute.xlu0 %851
      %853 = vrot.lane.b32.xlu0 %v822, 96
      %v854 = vpop.permute.xlu0 %853
      %855 = vrot.lane.b32.xlu0 %v824, 96
      %v856 = vpop.permute.xlu0 %855
      %857 = vrot.lane.b32.xlu0 %v826, 96
      %v858 = vpop.permute.xlu0 %857
      %859 = vrot.lane.b32.xlu0 %v828, 96
      %v860 = vpop.permute.xlu0 %859
      %861 = vrot.lane.b32.xlu0 %v830, 96
      %v862 = vpop.permute.xlu0 %861
      %863 = vrot.lane.b32.xlu0 %v832, 96
      %v864 = vpop.permute.xlu0 %863
      %865 = vrot.lane.b32.xlu0 %v834, 96
      %v866 = vpop.permute.xlu0 %865
      %867 = vrot.lane.b32.xlu0 %v836, 96
      %v868 = vpop.permute.xlu0 %867
      %869 = vrot.lane.b32.xlu0 %v838, 96
      %v870 = vpop.permute.xlu0 %869
      %871 = vrot.lane.b32.xlu0 %v840, 96
      %v872 = vpop.permute.xlu0 %871
      %v889 = vsel %vm578, %v379, %v515
      %v890 = vsel %vm578, %v381, %v519
      %v891 = vsel %vm578, %v383, %v523
      %v892 = vsel %vm578, %v385, %v527
      %v893 = vsel %vm578, %v387, %v531
      %v894 = vsel %vm578, %v389, %v535
      %v895 = vsel %vm578, %v391, %v539
      %v896 = vsel %vm578, %v393, %v543
      %v897 = vsel %vm578, %v395, %v547
      %v898 = vsel %vm578, %v397, %v551
      %v899 = vsel %vm578, %v399, %v555
      %v900 = vsel %vm578, %v401, %v559
      %v901 = vsel %vm578, %v403, %v563
      %v902 = vsel %vm578, %v405, %v567
      %v903 = vsel %vm578, %v407, %v571
      %v904 = vsel %vm578, %v409, %v575
      %v905 = vsel %vm758, %v579, %v695
      %v906 = vsel %vm758, %v580, %v699
      %v907 = vsel %vm758, %v581, %v703
      %v908 = vsel %vm758, %v582, %v707
      %v909 = vsel %vm758, %v583, %v711
      %v910 = vsel %vm758, %v584, %v715
      %v911 = vsel %vm758, %v585, %v719
      %v912 = vsel %vm758, %v586, %v723
      %v913 = vsel %vm758, %v587, %v727
      %v914 = vsel %vm758, %v588, %v731
      %v915 = vsel %vm758, %v589, %v735
      %v916 = vsel %vm758, %v590, %v739
      %v917 = vsel %vm758, %v591, %v743
      %v918 = vsel %vm758, %v592, %v747
      %v919 = vsel %vm758, %v593, %v751
      %v920 = vsel %vm758, %v594, %v755
      %vm921 = vcmask 785408
      %v922 = vsel %vm921, %v759, %v842
      %v923 = vsel %vm921, %v760, %v844
      %v924 = vsel %vm921, %v761, %v846
      %v925 = vsel %vm921, %v762, %v848
      %v926 = vsel %vm921, %v763, %v850
      %v927 = vsel %vm921, %v764, %v852
      %v928 = vsel %vm921, %v765, %v854
      %v929 = vsel %vm921, %v766, %v856
      %v930 = vsel %vm921, %v767, %v858
      %v931 = vsel %vm921, %v768, %v860
      %v932 = vsel %vm921, %v769, %v862
      %v933 = vsel %vm921, %v770, %v864
      %v934 = vsel %vm921, %v771, %v866
      %v935 = vsel %vm921, %v772, %v868
      %v936 = vsel %vm921, %v773, %v870
      %v937 = vsel %vm921, %v774, %v872
      %v938 = vpack.c.bf16 %v380, %v378
      %v939 = vpack.c.bf16 %v890, %v889
      %v940 = vpack.c.bf16 %v906, %v905
      %v941 = vpack.c.bf16 %v923, %v922
      %v942 = vpack.c.bf16 %v384, %v382
      %v943 = vpack.c.bf16 %v892, %v891
      %v944 = vpack.c.bf16 %v908, %v907
      %v945 = vpack.c.bf16 %v925, %v924
      %v946 = vpack.c.bf16 %v388, %v386
      %v947 = vpack.c.bf16 %v894, %v893
      %v948 = vpack.c.bf16 %v910, %v909
      %v949 = vpack.c.bf16 %v927, %v926
      %v950 = vpack.c.bf16 %v392, %v390
      %v951 = vpack.c.bf16 %v896, %v895
      %v952 = vpack.c.bf16 %v912, %v911
      %v953 = vpack.c.bf16 %v929, %v928
      %v954 = vpack.c.bf16 %v396, %v394
      %v955 = vpack.c.bf16 %v898, %v897
      %v956 = vpack.c.bf16 %v914, %v913
      %v957 = vpack.c.bf16 %v931, %v930
      %v958 = vpack.c.bf16 %v400, %v398
      %v959 = vpack.c.bf16 %v900, %v899
      %v960 = vpack.c.bf16 %v916, %v915
      %v961 = vpack.c.bf16 %v933, %v932
      %v962 = vpack.c.bf16 %v404, %v402
      %v963 = vpack.c.bf16 %v902, %v901
      %v964 = vpack.c.bf16 %v918, %v917
      %v965 = vpack.c.bf16 %v935, %v934
      %v966 = vpack.c.bf16 %v408, %v406
      %v967 = vpack.c.bf16 %v904, %v903
      %v968 = vpack.c.bf16 %v920, %v919
      %v969 = vpack.c.bf16 %v937, %v936
      %v970 = vld [vmem:[%s2] sm:$0xff]
      %v971 = vld [vmem:[%s2 + $0x8] sm:$0xff]
      %v972 = vld [vmem:[%s2 + $0x10] sm:$0xff]
      %v973 = vld [vmem:[%s2 + $0x18] sm:$0xff]
      %v974 = vld [vmem:[%s2 + $0x20] sm:$0xff]
      %v975 = vld [vmem:[%s2 + $0x28] sm:$0xff]
      %v976 = vld [vmem:[%s2 + $0x30] sm:$0xff]
      %v977 = vld [vmem:[%s2 + $0x38] sm:$0xff]
      %v978 = vld [vmem:[%s2 + $0x40] sm:$0xff]
      %v979 = vld [vmem:[%s2 + $0x48] sm:$0xff]
      %v980 = vld [vmem:[%s2 + $0x50] sm:$0xff]
      %v981 = vld [vmem:[%s2 + $0x58] sm:$0xff]
      %v982 = vld [vmem:[%s2 + $0x60] sm:$0xff]
      %v983 = vld [vmem:[%s2 + $0x68] sm:$0xff]
      %v984 = vld [vmem:[%s2 + $0x70] sm:$0xff]
      %v985 = vld [vmem:[%s2 + $0x78] sm:$0xff]
      %v986 = vld [vmem:[%s2 + $0x80] sm:$0xff]
      %v987 = vld [vmem:[%s2 + $0x88] sm:$0xff]
      %v988 = vld [vmem:[%s2 + $0x90] sm:$0xff]
      %v989 = vld [vmem:[%s2 + $0x98] sm:$0xff]
      %v990 = vld [vmem:[%s2 + $0xa0] sm:$0xff]
      %v991 = vld [vmem:[%s2 + $0xa8] sm:$0xff]
      %v992 = vld [vmem:[%s2 + $0xb0] sm:$0xff]
      %v993 = vld [vmem:[%s2 + $0xb8] sm:$0xff]
      %v994 = vld [vmem:[%s2 + $0xc0] sm:$0xff]
      %v995 = vld [vmem:[%s2 + $0xc8] sm:$0xff]
      %v996 = vld [vmem:[%s2 + $0xd0] sm:$0xff]
      %v997 = vld [vmem:[%s2 + $0xd8] sm:$0xff]
      %v998 = vld [vmem:[%s2 + $0xe0] sm:$0xff]
      %v999 = vld [vmem:[%s2 + $0xe8] sm:$0xff]
      %v1000 = vld [vmem:[%s2 + $0xf0] sm:$0xff]
      %v1001 = vld [vmem:[%s2 + $0xf8] sm:$0xff]
      %v1002 = vld [vmem:[%s2 + $0x100] sm:$0xff]
      %v1003 = vld [vmem:[%s2 + $0x108] sm:$0xff]
      %v1004 = vld [vmem:[%s2 + $0x110] sm:$0xff]
      %v1005 = vld [vmem:[%s2 + $0x118] sm:$0xff]
      %v1006 = vld [vmem:[%s2 + $0x120] sm:$0xff]
      %v1007 = vld [vmem:[%s2 + $0x128] sm:$0xff]
      %v1008 = vld [vmem:[%s2 + $0x130] sm:$0xff]
      %v1009 = vld [vmem:[%s2 + $0x138] sm:$0xff]
      %v1010 = vld [vmem:[%s2 + $0x140] sm:$0xff]
      %v1011 = vld [vmem:[%s2 + $0x148] sm:$0xff]
      %v1012 = vld [vmem:[%s2 + $0x150] sm:$0xff]
      %v1013 = vld [vmem:[%s2 + $0x158] sm:$0xff]
      %v1014 = vld [vmem:[%s2 + $0x160] sm:$0xff]
      %v1015 = vld [vmem:[%s2 + $0x168] sm:$0xff]
      %v1016 = vld [vmem:[%s2 + $0x170] sm:$0xff]
      %v1017 = vld [vmem:[%s2 + $0x178] sm:$0xff]
      %v1018 = vld [vmem:[%s2 + $0x180] sm:$0xff]
      %v1019 = vld [vmem:[%s2 + $0x188] sm:$0xff]
      %v1020 = vld [vmem:[%s2 + $0x190] sm:$0xff]
      %v1021 = vld [vmem:[%s2 + $0x198] sm:$0xff]
      %v1022 = vld [vmem:[%s2 + $0x1a0] sm:$0xff]
      %v1023 = vld [vmem:[%s2 + $0x1a8] sm:$0xff]
      %v1024 = vld [vmem:[%s2 + $0x1b0] sm:$0xff]
      %v1025 = vld [vmem:[%s2 + $0x1b8] sm:$0xff]
      %v1026 = vld [vmem:[%s2 + $0x1c0] sm:$0xff]
      %v1027 = vld [vmem:[%s2 + $0x1c8] sm:$0xff]
      %v1028 = vld [vmem:[%s2 + $0x1d0] sm:$0xff]
      %v1029 = vld [vmem:[%s2 + $0x1d8] sm:$0xff]
      %v1030 = vld [vmem:[%s2 + $0x1e0] sm:$0xff]
      %v1031 = vld [vmem:[%s2 + $0x1e8] sm:$0xff]
      %v1032 = vld [vmem:[%s2 + $0x1f0] sm:$0xff]
      %v1033 = vld [vmem:[%s2 + $0x1f8] sm:$0xff]
      %v1034 = vld [vmem:[%s2 + $0x200] sm:$0xff]
      %v1035 = vld [vmem:[%s2 + $0x208] sm:$0xff]
      %v1036 = vld [vmem:[%s2 + $0x210] sm:$0xff]
      %v1037 = vld [vmem:[%s2 + $0x218] sm:$0xff]
      %v1038 = vld [vmem:[%s2 + $0x220] sm:$0xff]
      %v1039 = vld [vmem:[%s2 + $0x228] sm:$0xff]
      %v1040 = vld [vmem:[%s2 + $0x230] sm:$0xff]
      %v1041 = vld [vmem:[%s2 + $0x238] sm:$0xff]
      %v1042 = vld [vmem:[%s2 + $0x240] sm:$0xff]
      %v1043 = vld [vmem:[%s2 + $0x248] sm:$0xff]
      %v1044 = vld [vmem:[%s2 + $0x250] sm:$0xff]
      %v1045 = vld [vmem:[%s2 + $0x258] sm:$0xff]
      %v1046 = vld [vmem:[%s2 + $0x260] sm:$0xff]
      %v1047 = vld [vmem:[%s2 + $0x268] sm:$0xff]
      %v1048 = vld [vmem:[%s2 + $0x270] sm:$0xff]
      %v1049 = vld [vmem:[%s2 + $0x278] sm:$0xff]
      %v1050 = vld [vmem:[%s2 + $0x280] sm:$0xff]
      %v1051 = vld [vmem:[%s2 + $0x288] sm:$0xff]
      %v1052 = vld [vmem:[%s2 + $0x290] sm:$0xff]
      %v1053 = vld [vmem:[%s2 + $0x298] sm:$0xff]
      %v1054 = vld [vmem:[%s2 + $0x2a0] sm:$0xff]
      %v1055 = vld [vmem:[%s2 + $0x2a8] sm:$0xff]
      %v1056 = vld [vmem:[%s2 + $0x2b0] sm:$0xff]
      %v1057 = vld [vmem:[%s2 + $0x2b8] sm:$0xff]
      %v1058 = vld [vmem:[%s2 + $0x2c0] sm:$0xff]
      %v1059 = vld [vmem:[%s2 + $0x2c8] sm:$0xff]
      %v1060 = vld [vmem:[%s2 + $0x2d0] sm:$0xff]
      %v1061 = vld [vmem:[%s2 + $0x2d8] sm:$0xff]
      %v1062 = vld [vmem:[%s2 + $0x2e0] sm:$0xff]
      %v1063 = vld [vmem:[%s2 + $0x2e8] sm:$0xff]
      %v1064 = vld [vmem:[%s2 + $0x2f0] sm:$0xff]
      %v1065 = vld [vmem:[%s2 + $0x2f8] sm:$0xff]
      %v1066 = vld [vmem:[%s2 + $0x300] sm:$0xff]
      %v1067 = vld [vmem:[%s2 + $0x308] sm:$0xff]
      %v1068 = vld [vmem:[%s2 + $0x310] sm:$0xff]
      %v1069 = vld [vmem:[%s2 + $0x318] sm:$0xff]
      %v1070 = vld [vmem:[%s2 + $0x320] sm:$0xff]
      %v1071 = vld [vmem:[%s2 + $0x328] sm:$0xff]
      %v1072 = vld [vmem:[%s2 + $0x330] sm:$0xff]
      %v1073 = vld [vmem:[%s2 + $0x338] sm:$0xff]
      %v1074 = vld [vmem:[%s2 + $0x340] sm:$0xff]
      %v1075 = vld [vmem:[%s2 + $0x348] sm:$0xff]
      %v1076 = vld [vmem:[%s2 + $0x350] sm:$0xff]
      %v1077 = vld [vmem:[%s2 + $0x358] sm:$0xff]
      %v1078 = vld [vmem:[%s2 + $0x360] sm:$0xff]
      %v1079 = vld [vmem:[%s2 + $0x368] sm:$0xff]
      %v1080 = vld [vmem:[%s2 + $0x370] sm:$0xff]
      %v1081 = vld [vmem:[%s2 + $0x378] sm:$0xff]
      %v1082 = vld [vmem:[%s2 + $0x380] sm:$0xff]
      %v1083 = vld [vmem:[%s2 + $0x388] sm:$0xff]
      %v1084 = vld [vmem:[%s2 + $0x390] sm:$0xff]
      %v1085 = vld [vmem:[%s2 + $0x398] sm:$0xff]
      %v1086 = vld [vmem:[%s2 + $0x3a0] sm:$0xff]
      %v1087 = vld [vmem:[%s2 + $0x3a8] sm:$0xff]
      %v1088 = vld [vmem:[%s2 + $0x3b0] sm:$0xff]
      %v1089 = vld [vmem:[%s2 + $0x3b8] sm:$0xff]
      %v1090 = vld [vmem:[%s2 + $0x3c0] sm:$0xff]
      %v1091 = vld [vmem:[%s2 + $0x3c8] sm:$0xff]
      %v1092 = vld [vmem:[%s2 + $0x3d0] sm:$0xff]
      %v1093 = vld [vmem:[%s2 + $0x3d8] sm:$0xff]
      %v1094 = vld [vmem:[%s2 + $0x3e0] sm:$0xff]
      %v1095 = vld [vmem:[%s2 + $0x3e8] sm:$0xff]
      %v1096 = vld [vmem:[%s2 + $0x3f0] sm:$0xff]
      %v1097 = vld [vmem:[%s2 + $0x3f8] sm:$0xff]
      %v1226 = vunpack.c.l.b16 %v970
      %v1227 = vunpack.c.h.b16 %v970
      %v1228 = vunpack.c.l.b16 %v971
      %v1229 = vunpack.c.h.b16 %v971
      %v1230 = vunpack.c.l.b16 %v972
      %v1231 = vunpack.c.h.b16 %v972
      %v1232 = vunpack.c.l.b16 %v973
      %v1233 = vunpack.c.h.b16 %v973
      %v1234 = vunpack.c.l.b16 %v974
      %v1235 = vunpack.c.h.b16 %v974
      %v1236 = vunpack.c.l.b16 %v975
      %v1237 = vunpack.c.h.b16 %v975
      %v1238 = vunpack.c.l.b16 %v976
      %v1239 = vunpack.c.h.b16 %v976
      %v1240 = vunpack.c.l.b16 %v977
      %v1241 = vunpack.c.h.b16 %v977
      %v1242 = vunpack.c.l.b16 %v978
      %v1243 = vunpack.c.h.b16 %v978
      %v1244 = vunpack.c.l.b16 %v979
      %v1245 = vunpack.c.h.b16 %v979
      %v1246 = vunpack.c.l.b16 %v980
      %v1247 = vunpack.c.h.b16 %v980
      %v1248 = vunpack.c.l.b16 %v981
      %v1249 = vunpack.c.h.b16 %v981
      %v1250 = vunpack.c.l.b16 %v982
      %v1251 = vunpack.c.h.b16 %v982
      %v1252 = vunpack.c.l.b16 %v983
      %v1253 = vunpack.c.h.b16 %v983
      %v1254 = vunpack.c.l.b16 %v984
      %v1255 = vunpack.c.h.b16 %v984
      %v1256 = vunpack.c.l.b16 %v985
      %v1257 = vunpack.c.h.b16 %v985
      %v1258 = vunpack.c.l.b16 %v986
      %v1259 = vunpack.c.h.b16 %v986
      %v1260 = vunpack.c.l.b16 %v987
      %v1261 = vunpack.c.h.b16 %v987
      %v1262 = vunpack.c.l.b16 %v988
      %v1263 = vunpack.c.h.b16 %v988
      %v1264 = vunpack.c.l.b16 %v989
      %v1265 = vunpack.c.h.b16 %v989
      %v1266 = vunpack.c.l.b16 %v990
      %v1267 = vunpack.c.h.b16 %v990
      %v1268 = vunpack.c.l.b16 %v991
      %v1269 = vunpack.c.h.b16 %v991
      %v1270 = vunpack.c.l.b16 %v992
      %v1271 = vunpack.c.h.b16 %v992
      %v1272 = vunpack.c.l.b16 %v993
      %v1273 = vunpack.c.h.b16 %v993
      %v1274 = vunpack.c.l.b16 %v994
      %v1275 = vunpack.c.h.b16 %v994
      %v1276 = vunpack.c.l.b16 %v995
      %v1277 = vunpack.c.h.b16 %v995
      %v1278 = vunpack.c.l.b16 %v996
      %v1279 = vunpack.c.h.b16 %v996
      %v1280 = vunpack.c.l.b16 %v997
      %v1281 = vunpack.c.h.b16 %v997
      %v1282 = vunpack.c.l.b16 %v998
      %v1283 = vunpack.c.h.b16 %v998
      %v1284 = vunpack.c.l.b16 %v999
      %v1285 = vunpack.c.h.b16 %v999
      %v1286 = vunpack.c.l.b16 %v1000
      %v1287 = vunpack.c.h.b16 %v1000
      %v1288 = vunpack.c.l.b16 %v1001
      %v1289 = vunpack.c.h.b16 %v1001
      %v1290 = vunpack.c.l.b16 %v1002
      %v1291 = vunpack.c.h.b16 %v1002
      %v1292 = vunpack.c.l.b16 %v1003
      %v1293 = vunpack.c.h.b16 %v1003
      %v1294 = vunpack.c.l.b16 %v1004
      %v1295 = vunpack.c.h.b16 %v1004
      %v1296 = vunpack.c.l.b16 %v1005
      %v1297 = vunpack.c.h.b16 %v1005
      %v1298 = vunpack.c.l.b16 %v1006
      %v1299 = vunpack.c.h.b16 %v1006
      %v1300 = vunpack.c.l.b16 %v1007
      %v1301 = vunpack.c.h.b16 %v1007
      %v1302 = vunpack.c.l.b16 %v1008
      %v1303 = vunpack.c.h.b16 %v1008
      %v1304 = vunpack.c.l.b16 %v1009
      %v1305 = vunpack.c.h.b16 %v1009
      %v1306 = vunpack.c.l.b16 %v1010
      %v1307 = vunpack.c.h.b16 %v1010
      %v1308 = vunpack.c.l.b16 %v1011
      %v1309 = vunpack.c.h.b16 %v1011
      %v1310 = vunpack.c.l.b16 %v1012
      %v1311 = vunpack.c.h.b16 %v1012
      %v1312 = vunpack.c.l.b16 %v1013
      %v1313 = vunpack.c.h.b16 %v1013
      %v1314 = vunpack.c.l.b16 %v1014
      %v1315 = vunpack.c.h.b16 %v1014
      %v1316 = vunpack.c.l.b16 %v1015
      %v1317 = vunpack.c.h.b16 %v1015
      %v1318 = vunpack.c.l.b16 %v1016
      %v1319 = vunpack.c.h.b16 %v1016
      %v1320 = vunpack.c.l.b16 %v1017
      %v1321 = vunpack.c.h.b16 %v1017
      %v1322 = vunpack.c.l.b16 %v1018
      %v1323 = vunpack.c.h.b16 %v1018
      %v1324 = vunpack.c.l.b16 %v1019
      %v1325 = vunpack.c.h.b16 %v1019
      %v1326 = vunpack.c.l.b16 %v1020
      %v1327 = vunpack.c.h.b16 %v1020
      %v1328 = vunpack.c.l.b16 %v1021
      %v1329 = vunpack.c.h.b16 %v1021
      %v1330 = vunpack.c.l.b16 %v1022
      %v1331 = vunpack.c.h.b16 %v1022
      %v1332 = vunpack.c.l.b16 %v1023
      %v1333 = vunpack.c.h.b16 %v1023
      %v1334 = vunpack.c.l.b16 %v1024
      %v1335 = vunpack.c.h.b16 %v1024
      %v1336 = vunpack.c.l.b16 %v1025
      %v1337 = vunpack.c.h.b16 %v1025
      %v1338 = vunpack.c.l.b16 %v1026
      %v1339 = vunpack.c.h.b16 %v1026
      %v1340 = vunpack.c.l.b16 %v1027
      %v1341 = vunpack.c.h.b16 %v1027
      %v1342 = vunpack.c.l.b16 %v1028
      %v1343 = vunpack.c.h.b16 %v1028
      %v1344 = vunpack.c.l.b16 %v1029
      %v1345 = vunpack.c.h.b16 %v1029
      %v1346 = vunpack.c.l.b16 %v1030
      %v1347 = vunpack.c.h.b16 %v1030
      %v1348 = vunpack.c.l.b16 %v1031
      %v1349 = vunpack.c.h.b16 %v1031
      %v1350 = vunpack.c.l.b16 %v1032
      %v1351 = vunpack.c.h.b16 %v1032
      %v1352 = vunpack.c.l.b16 %v1033
      %v1353 = vunpack.c.h.b16 %v1033
      %v1354 = vunpack.c.l.b16 %v1034
      %v1355 = vunpack.c.h.b16 %v1034
      %v1356 = vunpack.c.l.b16 %v1035
      %v1357 = vunpack.c.h.b16 %v1035
      %v1358 = vunpack.c.l.b16 %v1036
      %v1359 = vunpack.c.h.b16 %v1036
      %v1360 = vunpack.c.l.b16 %v1037
      %v1361 = vunpack.c.h.b16 %v1037
      %v1362 = vunpack.c.l.b16 %v1038
      %v1363 = vunpack.c.h.b16 %v1038
      %v1364 = vunpack.c.l.b16 %v1039
      %v1365 = vunpack.c.h.b16 %v1039
      %v1366 = vunpack.c.l.b16 %v1040
      %v1367 = vunpack.c.h.b16 %v1040
      %v1368 = vunpack.c.l.b16 %v1041
      %v1369 = vunpack.c.h.b16 %v1041
      %v1370 = vunpack.c.l.b16 %v1042
      %v1371 = vunpack.c.h.b16 %v1042
      %v1372 = vunpack.c.l.b16 %v1043
      %v1373 = vunpack.c.h.b16 %v1043
      %v1374 = vunpack.c.l.b16 %v1044
      %v1375 = vunpack.c.h.b16 %v1044
      %v1376 = vunpack.c.l.b16 %v1045
      %v1377 = vunpack.c.h.b16 %v1045
      %v1378 = vunpack.c.l.b16 %v1046
      %v1379 = vunpack.c.h.b16 %v1046
      %v1380 = vunpack.c.l.b16 %v1047
      %v1381 = vunpack.c.h.b16 %v1047
      %v1382 = vunpack.c.l.b16 %v1048
      %v1383 = vunpack.c.h.b16 %v1048
      %v1384 = vunpack.c.l.b16 %v1049
      %v1385 = vunpack.c.h.b16 %v1049
      %v1386 = vunpack.c.l.b16 %v1050
      %v1387 = vunpack.c.h.b16 %v1050
      %v1388 = vunpack.c.l.b16 %v1051
      %v1389 = vunpack.c.h.b16 %v1051
      %v1390 = vunpack.c.l.b16 %v1052
      %v1391 = vunpack.c.h.b16 %v1052
      %v1392 = vunpack.c.l.b16 %v1053
      %v1393 = vunpack.c.h.b16 %v1053
      %v1394 = vunpack.c.l.b16 %v1054
      %v1395 = vunpack.c.h.b16 %v1054
      %v1396 = vunpack.c.l.b16 %v1055
      %v1397 = vunpack.c.h.b16 %v1055
      %v1398 = vunpack.c.l.b16 %v1056
      %v1399 = vunpack.c.h.b16 %v1056
      %v1400 = vunpack.c.l.b16 %v1057
      %v1401 = vunpack.c.h.b16 %v1057
      %v1402 = vunpack.c.l.b16 %v1058
      %v1403 = vunpack.c.h.b16 %v1058
      %v1404 = vunpack.c.l.b16 %v1059
      %v1405 = vunpack.c.h.b16 %v1059
      %v1406 = vunpack.c.l.b16 %v1060
      %v1407 = vunpack.c.h.b16 %v1060
      %v1408 = vunpack.c.l.b16 %v1061
      %v1409 = vunpack.c.h.b16 %v1061
      %v1410 = vunpack.c.l.b16 %v1062
      %v1411 = vunpack.c.h.b16 %v1062
      %v1412 = vunpack.c.l.b16 %v1063
      %v1413 = vunpack.c.h.b16 %v1063
      %v1414 = vunpack.c.l.b16 %v1064
      %v1415 = vunpack.c.h.b16 %v1064
      %v1416 = vunpack.c.l.b16 %v1065
      %v1417 = vunpack.c.h.b16 %v1065
      %v1418 = vunpack.c.l.b16 %v1066
      %v1419 = vunpack.c.h.b16 %v1066
      %v1420 = vunpack.c.l.b16 %v1067
      %v1421 = vunpack.c.h.b16 %v1067
      %v1422 = vunpack.c.l.b16 %v1068
      %v1423 = vunpack.c.h.b16 %v1068
      %v1424 = vunpack.c.l.b16 %v1069
      %v1425 = vunpack.c.h.b16 %v1069
      %v1426 = vunpack.c.l.b16 %v1070
      %v1427 = vunpack.c.h.b16 %v1070
      %v1428 = vunpack.c.l.b16 %v1071
      %v1429 = vunpack.c.h.b16 %v1071
      %v1430 = vunpack.c.l.b16 %v1072
      %v1431 = vunpack.c.h.b16 %v1072
      %v1432 = vunpack.c.l.b16 %v1073
      %v1433 = vunpack.c.h.b16 %v1073
      %v1434 = vunpack.c.l.b16 %v1074
      %v1435 = vunpack.c.h.b16 %v1074
      %v1436 = vunpack.c.l.b16 %v1075
      %v1437 = vunpack.c.h.b16 %v1075
      %v1438 = vunpack.c.l.b16 %v1076
      %v1439 = vunpack.c.h.b16 %v1076
      %v1440 = vunpack.c.l.b16 %v1077
      %v1441 = vunpack.c.h.b16 %v1077
      %v1442 = vunpack.c.l.b16 %v1078
      %v1443 = vunpack.c.h.b16 %v1078
      %v1444 = vunpack.c.l.b16 %v1079
      %v1445 = vunpack.c.h.b16 %v1079
      %v1446 = vunpack.c.l.b16 %v1080
      %v1447 = vunpack.c.h.b16 %v1080
      %v1448 = vunpack.c.l.b16 %v1081
      %v1449 = vunpack.c.h.b16 %v1081
      %v1450 = vunpack.c.l.b16 %v1082
      %v1451 = vunpack.c.h.b16 %v1082
      %v1452 = vunpack.c.l.b16 %v1083
      %v1453 = vunpack.c.h.b16 %v1083
      %v1454 = vunpack.c.l.b16 %v1084
      %v1455 = vunpack.c.h.b16 %v1084
      %v1456 = vunpack.c.l.b16 %v1085
      %v1457 = vunpack.c.h.b16 %v1085
      %v1458 = vunpack.c.l.b16 %v1086
      %v1459 = vunpack.c.h.b16 %v1086
      %v1460 = vunpack.c.l.b16 %v1087
      %v1461 = vunpack.c.h.b16 %v1087
      %v1462 = vunpack.c.l.b16 %v1088
      %v1463 = vunpack.c.h.b16 %v1088
      %v1464 = vunpack.c.l.b16 %v1089
      %v1465 = vunpack.c.h.b16 %v1089
      %v1466 = vunpack.c.l.b16 %v1090
      %v1467 = vunpack.c.h.b16 %v1090
      %v1468 = vunpack.c.l.b16 %v1091
      %v1469 = vunpack.c.h.b16 %v1091
      %v1470 = vunpack.c.l.b16 %v1092
      %v1471 = vunpack.c.h.b16 %v1092
      %v1472 = vunpack.c.l.b16 %v1093
      %v1473 = vunpack.c.h.b16 %v1093
      %v1474 = vunpack.c.l.b16 %v1094
      %v1475 = vunpack.c.h.b16 %v1094
      %v1476 = vunpack.c.l.b16 %v1095
      %v1477 = vunpack.c.h.b16 %v1095
      %v1478 = vunpack.c.l.b16 %v1096
      %v1479 = vunpack.c.h.b16 %v1096
      %v1480 = vunpack.c.l.b16 %v1097
      %v1481 = vunpack.c.h.b16 %v1097
      %v1482 = vpack.c.b16 %v1230, %v1226
      %v1483 = vpack.c.b16 %v1231, %v1227
      %v1484 = vpack.c.b16 %v1232, %v1228
      %v1485 = vpack.c.b16 %v1233, %v1229
      %v1486 = vpack.c.b16 %v1238, %v1234
      %v1487 = vpack.c.b16 %v1239, %v1235
      %v1488 = vpack.c.b16 %v1240, %v1236
      %v1489 = vpack.c.b16 %v1241, %v1237
      %v1490 = vpack.c.b16 %v1246, %v1242
      %v1491 = vpack.c.b16 %v1247, %v1243
      %v1492 = vpack.c.b16 %v1248, %v1244
      %v1493 = vpack.c.b16 %v1249, %v1245
      %v1494 = vpack.c.b16 %v1254, %v1250
      %v1495 = vpack.c.b16 %v1255, %v1251
      %v1496 = vpack.c.b16 %v1256, %v1252
      %v1497 = vpack.c.b16 %v1257, %v1253
      %v1498 = vpack.c.b16 %v1262, %v1258
      %v1499 = vpack.c.b16 %v1263, %v1259
      %v1500 = vpack.c.b16 %v1264, %v1260
      %v1501 = vpack.c.b16 %v1265, %v1261
      %v1502 = vpack.c.b16 %v1270, %v1266
      %v1503 = vpack.c.b16 %v1271, %v1267
      %v1504 = vpack.c.b16 %v1272, %v1268
      %v1505 = vpack.c.b16 %v1273, %v1269
      %v1506 = vpack.c.b16 %v1278, %v1274
      %v1507 = vpack.c.b16 %v1279, %v1275
      %v1508 = vpack.c.b16 %v1280, %v1276
      %v1509 = vpack.c.b16 %v1281, %v1277
      %v1510 = vpack.c.b16 %v1286, %v1282
      %v1511 = vpack.c.b16 %v1287, %v1283
      %v1512 = vpack.c.b16 %v1288, %v1284
      %v1513 = vpack.c.b16 %v1289, %v1285
      %v1514 = vpack.c.b16 %v1294, %v1290
      %v1515 = vpack.c.b16 %v1295, %v1291
      %v1516 = vpack.c.b16 %v1296, %v1292
      %v1517 = vpack.c.b16 %v1297, %v1293
      %v1518 = vpack.c.b16 %v1302, %v1298
      %v1519 = vpack.c.b16 %v1303, %v1299
      %v1520 = vpack.c.b16 %v1304, %v1300
      %v1521 = vpack.c.b16 %v1305, %v1301
      %v1522 = vpack.c.b16 %v1310, %v1306
      %v1523 = vpack.c.b16 %v1311, %v1307
      %v1524 = vpack.c.b16 %v1312, %v1308
      %v1525 = vpack.c.b16 %v1313, %v1309
      %v1526 = vpack.c.b16 %v1318, %v1314
      %v1527 = vpack.c.b16 %v1319, %v1315
      %v1528 = vpack.c.b16 %v1320, %v1316
      %v1529 = vpack.c.b16 %v1321, %v1317
      %v1530 = vpack.c.b16 %v1326, %v1322
      %v1531 = vpack.c.b16 %v1327, %v1323
      %v1532 = vpack.c.b16 %v1328, %v1324
      %v1533 = vpack.c.b16 %v1329, %v1325
      %v1534 = vpack.c.b16 %v1334, %v1330
      %v1535 = vpack.c.b16 %v1335, %v1331
      %v1536 = vpack.c.b16 %v1336, %v1332
      %v1537 = vpack.c.b16 %v1337, %v1333
      %v1538 = vpack.c.b16 %v1342, %v1338
      %v1539 = vpack.c.b16 %v1343, %v1339
      %v1540 = vpack.c.b16 %v1344, %v1340
      %v1541 = vpack.c.b16 %v1345, %v1341
      %v1542 = vpack.c.b16 %v1350, %v1346
      %v1543 = vpack.c.b16 %v1351, %v1347
      %v1544 = vpack.c.b16 %v1352, %v1348
      %v1545 = vpack.c.b16 %v1353, %v1349
      %v1546 = vpack.c.b16 %v1358, %v1354
      %v1547 = vpack.c.b16 %v1359, %v1355
      %v1548 = vpack.c.b16 %v1360, %v1356
      %v1549 = vpack.c.b16 %v1361, %v1357
      %v1550 = vpack.c.b16 %v1366, %v1362
      %v1551 = vpack.c.b16 %v1367, %v1363
      %v1552 = vpack.c.b16 %v1368, %v1364
      %v1553 = vpack.c.b16 %v1369, %v1365
      %v1554 = vpack.c.b16 %v1374, %v1370
      %v1555 = vpack.c.b16 %v1375, %v1371
      %v1556 = vpack.c.b16 %v1376, %v1372
      %v1557 = vpack.c.b16 %v1377, %v1373
      %v1558 = vpack.c.b16 %v1382, %v1378
      %v1559 = vpack.c.b16 %v1383, %v1379
      %v1560 = vpack.c.b16 %v1384, %v1380
      %v1561 = vpack.c.b16 %v1385, %v1381
      %v1562 = vpack.c.b16 %v1390, %v1386
      %v1563 = vpack.c.b16 %v1391, %v1387
      %v1564 = vpack.c.b16 %v1392, %v1388
      %v1565 = vpack.c.b16 %v1393, %v1389
      %v1566 = vpack.c.b16 %v1398, %v1394
      %v1567 = vpack.c.b16 %v1399, %v1395
      %v1568 = vpack.c.b16 %v1400, %v1396
      %v1569 = vpack.c.b16 %v1401, %v1397
      %v1570 = vpack.c.b16 %v1406, %v1402
      %v1571 = vpack.c.b16 %v1407, %v1403
      %v1572 = vpack.c.b16 %v1408, %v1404
      %v1573 = vpack.c.b16 %v1409, %v1405
      %v1574 = vpack.c.b16 %v1414, %v1410
      %v1575 = vpack.c.b16 %v1415, %v1411
      %v1576 = vpack.c.b16 %v1416, %v1412
      %v1577 = vpack.c.b16 %v1417, %v1413
      %v1578 = vpack.c.b16 %v1422, %v1418
      %v1579 = vpack.c.b16 %v1423, %v1419
      %v1580 = vpack.c.b16 %v1424, %v1420
      %v1581 = vpack.c.b16 %v1425, %v1421
      %v1582 = vpack.c.b16 %v1430, %v1426
      %v1583 = vpack.c.b16 %v1431, %v1427
      %v1584 = vpack.c.b16 %v1432, %v1428
      %v1585 = vpack.c.b16 %v1433, %v1429
      %v1586 = vpack.c.b16 %v1438, %v1434
      %v1587 = vpack.c.b16 %v1439, %v1435
      %v1588 = vpack.c.b16 %v1440, %v1436
      %v1589 = vpack.c.b16 %v1441, %v1437
      %v1590 = vpack.c.b16 %v1446, %v1442
      %v1591 = vpack.c.b16 %v1447, %v1443
      %v1592 = vpack.c.b16 %v1448, %v1444
      %v1593 = vpack.c.b16 %v1449, %v1445
      %v1594 = vpack.c.b16 %v1454, %v1450
      %v1595 = vpack.c.b16 %v1455, %v1451
      %v1596 = vpack.c.b16 %v1456, %v1452
      %v1597 = vpack.c.b16 %v1457, %v1453
      %v1598 = vpack.c.b16 %v1462, %v1458
      %v1599 = vpack.c.b16 %v1463, %v1459
      %v1600 = vpack.c.b16 %v1464, %v1460
      %v1601 = vpack.c.b16 %v1465, %v1461
      %v1602 = vpack.c.b16 %v1470, %v1466
      %v1603 = vpack.c.b16 %v1471, %v1467
      %v1604 = vpack.c.b16 %v1472, %v1468
      %v1605 = vpack.c.b16 %v1473, %v1469
      %v1606 = vpack.c.b16 %v1478, %v1474
      %v1607 = vpack.c.b16 %v1479, %v1475
      %v1608 = vpack.c.b16 %v1480, %v1476
      %v1609 = vpack.c.b16 %v1481, %v1477
      %1738 = vmatprep.subr.bf16.mxu0 %v1483
      %1739 = vmatpush1.bf16.msra.mxu0 %v1482
      %1740 = vmatprep.subr.bf16.mxu0 %v1487
      %1741 = vmatpush1.bf16.msra.mxu0 %v1486
      %1742 = vmatprep.subr.bf16.mxu0 %v1491
      %1743 = vmatpush1.bf16.msra.mxu0 %v1490
      %1744 = vmatprep.subr.bf16.mxu0 %v1495
      %1745 = vmatpush1.bf16.msra.mxu0 %v1494
      %1746 = vmatprep.subr.bf16.mxu0 %v1499
      %1747 = vmatpush1.bf16.msra.mxu0 %v1498
      %1748 = vmatprep.subr.bf16.mxu0 %v1503
      %1749 = vmatpush1.bf16.msra.mxu0 %v1502
      %1750 = vmatprep.subr.bf16.mxu0 %v1507
      %1751 = vmatpush1.bf16.msra.mxu0 %v1506
      %1752 = vmatprep.subr.bf16.mxu0 %v1511
      %1753 = vmatpush1.bf16.msra.mxu0 %v1510
      %1754 = vmatprep.subr.bf16.mxu0 %v1515
      %1755 = vmatpush1.bf16.msra.mxu0 %v1514
      %1756 = vmatprep.subr.bf16.mxu0 %v1519
      %1757 = vmatpush1.bf16.msra.mxu0 %v1518
      %1758 = vmatprep.subr.bf16.mxu0 %v1523
      %1759 = vmatpush1.bf16.msra.mxu0 %v1522
      %1760 = vmatprep.subr.bf16.mxu0 %v1527
      %1761 = vmatpush1.bf16.msra.mxu0 %v1526
      %1762 = vmatprep.subr.bf16.mxu0 %v1531
      %1763 = vmatpush1.bf16.msra.mxu0 %v1530
      %1764 = vmatprep.subr.bf16.mxu0 %v1535
      %1765 = vmatpush1.bf16.msra.mxu0 %v1534
      %1766 = vmatprep.subr.bf16.mxu0 %v1539
      %1767 = vmatpush1.bf16.msra.mxu0 %v1538
      %1768 = vmatprep.subr.bf16.mxu0 %v1543
      %1769 = vmatpush1.bf16.msra.mxu0 %v1542
      %1770 = vmatprep.mubr.bf16.mxu0 %v939
      %1771 = vmatmul.mubr.bf16.gmra.mrb[0].mxu0 %v938
      %v1772 = vpop.f32.mrb[0].mxu0
      %v1773 = vadd.f32 0.0, %v1772
      %v1774 = vpop.f32.mrb[0].mxu0
      %v1775 = vadd.f32 0.0, %v1774
      %v1776 = vpop.f32.mrb[0].mxu0
      %v1777 = vadd.f32 0.0, %v1776
      %v1778 = vpop.f32.mrb[0].mxu0
      %v1779 = vadd.f32 0.0, %v1778
      %1780 = vmatprep.mubr.bf16.mxu0 %v943
      %1781 = vmatmul.mubr.bf16.gmra.mrb[0].mxu0 %v942
      %v1782 = vpop.f32.mrb[0].mxu0
      %v1783 = vadd.f32 0.0, %v1782
      %v1784 = vpop.f32.mrb[0].mxu0
      %v1785 = vadd.f32 0.0, %v1784
      %v1786 = vpop.f32.mrb[0].mxu0
      %v1787 = vadd.f32 0.0, %v1786
      %v1788 = vpop.f32.mrb[0].mxu0
      %v1789 = vadd.f32 0.0, %v1788
      %1790 = vmatprep.mubr.bf16.mxu0 %v947
      %1791 = vmatmul.mubr.bf16.gmra.mrb[0].mxu0 %v946
      %v1792 = vpop.f32.mrb[0].mxu0
      %v1793 = vadd.f32 0.0, %v1792
      %v1794 = vpop.f32.mrb[0].mxu0
      %v1795 = vadd.f32 0.0, %v1794
      %v1796 = vpop.f32.mrb[0].mxu0
      %v1797 = vadd.f32 0.0, %v1796
      %v1798 = vpop.f32.mrb[0].mxu0
      %v1799 = vadd.f32 0.0, %v1798
      %1800 = vmatprep.mubr.bf16.mxu0 %v951
      %1801 = vmatmul.mubr.bf16.gmra.mrb[0].mxu0 %v950
      %v1802 = vpop.f32.mrb[0].mxu0
      %v1803 = vadd.f32 0.0, %v1802
      %v1804 = vpop.f32.mrb[0].mxu0
      %v1805 = vadd.f32 0.0, %v1804
      %v1806 = vpop.f32.mrb[0].mxu0
      %v1807 = vadd.f32 0.0, %v1806
      %v1808 = vpop.f32.mrb[0].mxu0
      %v1809 = vadd.f32 0.0, %v1808
      %1810 = vmatprep.mubr.bf16.mxu0 %v955
      %1811 = vmatmul.mubr.bf16.gmra.mrb[0].mxu0 %v954
      %v1812 = vpop.f32.mrb[0].mxu0
      %v1813 = vadd.f32 0.0, %v1812
      %v1814 = vpop.f32.mrb[0].mxu0
      %v1815 = vadd.f32 0.0, %v1814
      %v1816 = vpop.f32.mrb[0].mxu0
      %v1817 = vadd.f32 0.0, %v1816
      %v1818 = vpop.f32.mrb[0].mxu0
      %v1819 = vadd.f32 0.0, %v1818
      %1820 = vmatprep.mubr.bf16.mxu0 %v959
      %1821 = vmatmul.mubr.bf16.gmra.mrb[0].mxu0 %v958
      %v1822 = vpop.f32.mrb[0].mxu0
      %v1823 = vadd.f32 0.0, %v1822
      %v1824 = vpop.f32.mrb[0].mxu0
      %v1825 = vadd.f32 0.0, %v1824
      %v1826 = vpop.f32.mrb[0].mxu0
      %v1827 = vadd.f32 0.0, %v1826
      %v1828 = vpop.f32.mrb[0].mxu0
      %v1829 = vadd.f32 0.0, %v1828
      %1830 = vmatprep.mubr.bf16.mxu0 %v963
      %1831 = vmatmul.mubr.bf16.gmra.mrb[0].mxu0 %v962
      %v1832 = vpop.f32.mrb[0].mxu0
      %v1833 = vadd.f32 0.0, %v1832
      %v1834 = vpop.f32.mrb[0].mxu0
      %v1835 = vadd.f32 0.0, %v1834
      %v1836 = vpop.f32.mrb[0].mxu0
      %v1837 = vadd.f32 0.0, %v1836
      %v1838 = vpop.f32.mrb[0].mxu0
      %v1839 = vadd.f32 0.0, %v1838
      %1840 = vmatprep.mubr.bf16.mxu0 %v967
      %1841 = vmatmul.mubr.bf16.gmra.mrb[0].mxu0 %v966
      %v1842 = vpop.f32.mrb[0].mxu0
      %v1843 = vadd.f32 0.0, %v1842
      %v1844 = vpop.f32.mrb[0].mxu0
      %v1845 = vadd.f32 0.0, %v1844
      %v1846 = vpop.f32.mrb[0].mxu0
      %v1847 = vadd.f32 0.0, %v1846
      %v1848 = vpop.f32.mrb[0].mxu0
      %v1849 = vadd.f32 0.0, %v1848
      %1850 = vdwg.mxu0
      %1851 = vmatprep.subr.bf16.mxu0 %v1547
      %1852 = vmatpush1.bf16.msra.mxu0 %v1546
      %1853 = vmatprep.subr.bf16.mxu0 %v1551
      %1854 = vmatpush1.bf16.msra.mxu0 %v1550
      %1855 = vmatprep.subr.bf16.mxu0 %v1555
      %1856 = vmatpush1.bf16.msra.mxu0 %v1554
      %1857 = vmatprep.subr.bf16.mxu0 %v1559
      %1858 = vmatpush1.bf16.msra.mxu0 %v1558
      %1859 = vmatprep.subr.bf16.mxu0 %v1563
      %1860 = vmatpush1.bf16.msra.mxu0 %v1562
      %1861 = vmatprep.subr.bf16.mxu0 %v1567
      %1862 = vmatpush1.bf16.msra.mxu0 %v1566
      %1863 = vmatprep.subr.bf16.mxu0 %v1571
      %1864 = vmatpush1.bf16.msra.mxu0 %v1570
      %1865 = vmatprep.subr.bf16.mxu0 %v1575
      %1866 = vmatpush1.bf16.msra.mxu0 %v1574
      %1867 = vmatprep.subr.bf16.mxu0 %v1579
      %1868 = vmatpush1.bf16.msra.mxu0 %v1578
      %1869 = vmatprep.subr.bf16.mxu0 %v1583
      %1870 = vmatpush1.bf16.msra.mxu0 %v1582
      %1871 = vmatprep.subr.bf16.mxu0 %v1587
      %1872 = vmatpush1.bf16.msra.mxu0 %v1586
      %1873 = vmatprep.subr.bf16.mxu0 %v1591
      %1874 = vmatpush1.bf16.msra.mxu0 %v1590
      %1875 = vmatprep.subr.bf16.mxu0 %v1595
      %1876 = vmatpush1.bf16.msra.mxu0 %v1594
      %1877 = vmatprep.subr.bf16.mxu0 %v1599
      %1878 = vmatpush1.bf16.msra.mxu0 %v1598
      %1879 = vmatprep.subr.bf16.mxu0 %v1603
      %1880 = vmatpush1.bf16.msra.mxu0 %v1602
      %1881 = vmatprep.subr.bf16.mxu0 %v1607
      %1882 = vmatpush1.bf16.msra.mxu0 %v1606
      %1883 = vmatprep.mubr.bf16.mxu0 %v941
      %1884 = vmatmul.mubr.bf16.gmra.mrb[0].mxu0 %v940
      %v1885 = vpop.f32.mrb[0].mxu0
      %v1886 = vadd.f32 %v1773, %v1885
      %v1887 = vpop.f32.mrb[0].mxu0
      %v1888 = vadd.f32 %v1775, %v1887
      %v1889 = vpop.f32.mrb[0].mxu0
      %v1890 = vadd.f32 %v1777, %v1889
      %v1891 = vpop.f32.mrb[0].mxu0
      %v1892 = vadd.f32 %v1779, %v1891
      %1893 = vmatprep.mubr.bf16.mxu0 %v945
      %1894 = vmatmul.mubr.bf16.gmra.mrb[0].mxu0 %v944
      %v1895 = vpop.f32.mrb[0].mxu0
      %v1896 = vadd.f32 %v1783, %v1895
      %v1897 = vpop.f32.mrb[0].mxu0
      %v1898 = vadd.f32 %v1785, %v1897
      %v1899 = vpop.f32.mrb[0].mxu0
      %v1900 = vadd.f32 %v1787, %v1899
      %v1901 = vpop.f32.mrb[0].mxu0
      %v1902 = vadd.f32 %v1789, %v1901
      %1903 = vmatprep.mubr.bf16.mxu0 %v949
      %1904 = vmatmul.mubr.bf16.gmra.mrb[0].mxu0 %v948
      %v1905 = vpop.f32.mrb[0].mxu0
      %v1906 = vadd.f32 %v1793, %v1905
      %v1907 = vpop.f32.mrb[0].mxu0
      %v1908 = vadd.f32 %v1795, %v1907
      %v1909 = vpop.f32.mrb[0].mxu0
      %v1910 = vadd.f32 %v1797, %v1909
      %v1911 = vpop.f32.mrb[0].mxu0
      %v1912 = vadd.f32 %v1799, %v1911
      %1913 = vmatprep.mubr.bf16.mxu0 %v953
      %1914 = vmatmul.mubr.bf16.gmra.mrb[0].mxu0 %v952
      %v1915 = vpop.f32.mrb[0].mxu0
      %v1916 = vadd.f32 %v1803, %v1915
      %v1917 = vpop.f32.mrb[0].mxu0
      %v1918 = vadd.f32 %v1805, %v1917
      %v1919 = vpop.f32.mrb[0].mxu0
      %v1920 = vadd.f32 %v1807, %v1919
      %v1921 = vpop.f32.mrb[0].mxu0
      %v1922 = vadd.f32 %v1809, %v1921
      %1923 = vmatprep.mubr.bf16.mxu0 %v957
      %1924 = vmatmul.mubr.bf16.gmra.mrb[0].mxu0 %v956
      %v1925 = vpop.f32.mrb[0].mxu0
      %v1926 = vadd.f32 %v1813, %v1925
      %v1927 = vpop.f32.mrb[0].mxu0
      %v1928 = vadd.f32 %v1815, %v1927
      %v1929 = vpop.f32.mrb[0].mxu0
      %v1930 = vadd.f32 %v1817, %v1929
      %v1931 = vpop.f32.mrb[0].mxu0
      %v1932 = vadd.f32 %v1819, %v1931
      %1933 = vmatprep.mubr.bf16.mxu0 %v961
      %1934 = vmatmul.mubr.bf16.gmra.mrb[0].mxu0 %v960
      %v1935 = vpop.f32.mrb[0].mxu0
      %v1936 = vadd.f32 %v1823, %v1935
      %v1937 = vpop.f32.mrb[0].mxu0
      %v1938 = vadd.f32 %v1825, %v1937
      %v1939 = vpop.f32.mrb[0].mxu0
      %v1940 = vadd.f32 %v1827, %v1939
      %v1941 = vpop.f32.mrb[0].mxu0
      %v1942 = vadd.f32 %v1829, %v1941
      %1943 = vmatprep.mubr.bf16.mxu0 %v965
      %1944 = vmatmul.mubr.bf16.gmra.mrb[0].mxu0 %v964
      %v1945 = vpop.f32.mrb[0].mxu0
      %v1946 = vadd.f32 %v1833, %v1945
      %v1947 = vpop.f32.mrb[0].mxu0
      %v1948 = vadd.f32 %v1835, %v1947
      %v1949 = vpop.f32.mrb[0].mxu0
      %v1950 = vadd.f32 %v1837, %v1949
      %v1951 = vpop.f32.mrb[0].mxu0
      %v1952 = vadd.f32 %v1839, %v1951
      %1953 = vmatprep.mubr.bf16.mxu0 %v969
      %1954 = vmatmul.mubr.bf16.gmra.mrb[0].mxu0 %v968
      %v1955 = vpop.f32.mrb[0].mxu0
      %v1956 = vadd.f32 %v1843, %v1955
      %v1957 = vpop.f32.mrb[0].mxu0
      %v1958 = vadd.f32 %v1845, %v1957
      %v1959 = vpop.f32.mrb[0].mxu0
      %v1960 = vadd.f32 %v1847, %v1959
      %v1961 = vpop.f32.mrb[0].mxu0
      %v1962 = vadd.f32 %v1849, %v1961
      %1963 = vdwg.mxu0
      %1964 = vmatprep.subr.bf16.mxu0 %v1485
      %1965 = vmatpush1.bf16.msra.mxu0 %v1484
      %1966 = vmatprep.subr.bf16.mxu0 %v1489
      %1967 = vmatpush1.bf16.msra.mxu0 %v1488
      %1968 = vmatprep.subr.bf16.mxu0 %v1493
      %1969 = vmatpush1.bf16.msra.mxu0 %v1492
      %1970 = vmatprep.subr.bf16.mxu0 %v1497
      %1971 = vmatpush1.bf16.msra.mxu0 %v1496
      %1972 = vmatprep.subr.bf16.mxu0 %v1501
      %1973 = vmatpush1.bf16.msra.mxu0 %v1500
      %1974 = vmatprep.subr.bf16.mxu0 %v1505
      %1975 = vmatpush1.bf16.msra.mxu0 %v1504
      %1976 = vmatprep.subr.bf16.mxu0 %v1509
      %1977 = vmatpush1.bf16.msra.mxu0 %v1508
      %1978 = vmatprep.subr.bf16.mxu0 %v1513
      %1979 = vmatpush1.bf16.msra.mxu0 %v1512
      %1980 = vmatprep.subr.bf16.mxu0 %v1517
      %1981 = vmatpush1.bf16.msra.mxu0 %v1516
      %1982 = vmatprep.subr.bf16.mxu0 %v1521
      %1983 = vmatpush1.bf16.msra.mxu0 %v1520
      %1984 = vmatprep.subr.bf16.mxu0 %v1525
      %1985 = vmatpush1.bf16.msra.mxu0 %v1524
      %1986 = vmatprep.subr.bf16.mxu0 %v1529
      %1987 = vmatpush1.bf16.msra.mxu0 %v1528
      %1988 = vmatprep.subr.bf16.mxu0 %v1533
      %1989 = vmatpush1.bf16.msra.mxu0 %v1532
      %1990 = vmatprep.subr.bf16.mxu0 %v1537
      %1991 = vmatpush1.bf16.msra.mxu0 %v1536
      %1992 = vmatprep.subr.bf16.mxu0 %v1541
      %1993 = vmatpush1.bf16.msra.mxu0 %v1540
      %1994 = vmatprep.subr.bf16.mxu0 %v1545
      %1995 = vmatpush1.bf16.msra.mxu0 %v1544
      %1996 = vmatprep.mubr.bf16.mxu0 %v939
      %1997 = vmatmul.mubr.bf16.gmra.mrb[0].mxu0 %v938
      %v1998 = vpop.f32.mrb[0].mxu0
      %v1999 = vadd.f32 0.0, %v1998
      %v2000 = vpop.f32.mrb[0].mxu0
      %v2001 = vadd.f32 0.0, %v2000
      %v2002 = vpop.f32.mrb[0].mxu0
      %v2003 = vadd.f32 0.0, %v2002
      %v2004 = vpop.f32.mrb[0].mxu0
      %v2005 = vadd.f32 0.0, %v2004
      %2006 = vmatprep.mubr.bf16.mxu0 %v943
      %2007 = vmatmul.mubr.bf16.gmra.mrb[0].mxu0 %v942
      %v2008 = vpop.f32.mrb[0].mxu0
      %v2009 = vadd.f32 0.0, %v2008
      %v2010 = vpop.f32.mrb[0].mxu0
      %v2011 = vadd.f32 0.0, %v2010
      %v2012 = vpop.f32.mrb[0].mxu0
      %v2013 = vadd.f32 0.0, %v2012
      %v2014 = vpop.f32.mrb[0].mxu0
      %v2015 = vadd.f32 0.0, %v2014
      %2016 = vmatprep.mubr.bf16.mxu0 %v947
      %2017 = vmatmul.mubr.bf16.gmra.mrb[0].mxu0 %v946
      %v2018 = vpop.f32.mrb[0].mxu0
      %v2019 = vadd.f32 0.0, %v2018
      %v2020 = vpop.f32.mrb[0].mxu0
      %v2021 = vadd.f32 0.0, %v2020
      %v2022 = vpop.f32.mrb[0].mxu0
      %v2023 = vadd.f32 0.0, %v2022
      %v2024 = vpop.f32.mrb[0].mxu0
      %v2025 = vadd.f32 0.0, %v2024
      %2026 = vmatprep.mubr.bf16.mxu0 %v951
      %2027 = vmatmul.mubr.bf16.gmra.mrb[0].mxu0 %v950
      %v2028 = vpop.f32.mrb[0].mxu0
      %v2029 = vadd.f32 0.0, %v2028
      %v2030 = vpop.f32.mrb[0].mxu0
      %v2031 = vadd.f32 0.0, %v2030
      %v2032 = vpop.f32.mrb[0].mxu0
      %v2033 = vadd.f32 0.0, %v2032
      %v2034 = vpop.f32.mrb[0].mxu0
      %v2035 = vadd.f32 0.0, %v2034
      %2036 = vmatprep.mubr.bf16.mxu0 %v955
      %2037 = vmatmul.mubr.bf16.gmra.mrb[0].mxu0 %v954
      %v2038 = vpop.f32.mrb[0].mxu0
      %v2039 = vadd.f32 0.0, %v2038
      %v2040 = vpop.f32.mrb[0].mxu0
      %v2041 = vadd.f32 0.0, %v2040
      %v2042 = vpop.f32.mrb[0].mxu0
      %v2043 = vadd.f32 0.0, %v2042
      %v2044 = vpop.f32.mrb[0].mxu0
      %v2045 = vadd.f32 0.0, %v2044
      %2046 = vmatprep.mubr.bf16.mxu0 %v959
      %2047 = vmatmul.mubr.bf16.gmra.mrb[0].mxu0 %v958
      %v2048 = vpop.f32.mrb[0].mxu0
      %v2049 = vadd.f32 0.0, %v2048
      %v2050 = vpop.f32.mrb[0].mxu0
      %v2051 = vadd.f32 0.0, %v2050
      %v2052 = vpop.f32.mrb[0].mxu0
      %v2053 = vadd.f32 0.0, %v2052
      %v2054 = vpop.f32.mrb[0].mxu0
      %v2055 = vadd.f32 0.0, %v2054
      %2056 = vmatprep.mubr.bf16.mxu0 %v963
      %2057 = vmatmul.mubr.bf16.gmra.mrb[0].mxu0 %v962
      %v2058 = vpop.f32.mrb[0].mxu0
      %v2059 = vadd.f32 0.0, %v2058
      %v2060 = vpop.f32.mrb[0].mxu0
      %v2061 = vadd.f32 0.0, %v2060
      %v2062 = vpop.f32.mrb[0].mxu0
      %v2063 = vadd.f32 0.0, %v2062
      %v2064 = vpop.f32.mrb[0].mxu0
      %v2065 = vadd.f32 0.0, %v2064
      %2066 = vmatprep.mubr.bf16.mxu0 %v967
      %2067 = vmatmul.mubr.bf16.gmra.mrb[0].mxu0 %v966
      %v2068 = vpop.f32.mrb[0].mxu0
      %v2069 = vadd.f32 0.0, %v2068
      %v2070 = vpop.f32.mrb[0].mxu0
      %v2071 = vadd.f32 0.0, %v2070
      %v2072 = vpop.f32.mrb[0].mxu0
      %v2073 = vadd.f32 0.0, %v2072
      %v2074 = vpop.f32.mrb[0].mxu0
      %v2075 = vadd.f32 0.0, %v2074
      %2076 = vdwg.mxu0
      %2077 = vmatprep.subr.bf16.mxu0 %v1549
      %2078 = vmatpush1.bf16.msra.mxu0 %v1548
      %2079 = vmatprep.subr.bf16.mxu0 %v1553
      %2080 = vmatpush1.bf16.msra.mxu0 %v1552
      %2081 = vmatprep.subr.bf16.mxu0 %v1557
      %2082 = vmatpush1.bf16.msra.mxu0 %v1556
      %2083 = vmatprep.subr.bf16.mxu0 %v1561
      %2084 = vmatpush1.bf16.msra.mxu0 %v1560
      %2085 = vmatprep.subr.bf16.mxu0 %v1565
      %2086 = vmatpush1.bf16.msra.mxu0 %v1564
      %2087 = vmatprep.subr.bf16.mxu0 %v1569
      %2088 = vmatpush1.bf16.msra.mxu0 %v1568
      %2089 = vmatprep.subr.bf16.mxu0 %v1573
      %2090 = vmatpush1.bf16.msra.mxu0 %v1572
      %2091 = vmatprep.subr.bf16.mxu0 %v1577
      %2092 = vmatpush1.bf16.msra.mxu0 %v1576
      %2093 = vmatprep.subr.bf16.mxu0 %v1581
      %2094 = vmatpush1.bf16.msra.mxu0 %v1580
      %2095 = vmatprep.subr.bf16.mxu0 %v1585
      %2096 = vmatpush1.bf16.msra.mxu0 %v1584
      %2097 = vmatprep.subr.bf16.mxu0 %v1589
      %2098 = vmatpush1.bf16.msra.mxu0 %v1588
      %2099 = vmatprep.subr.bf16.mxu0 %v1593
      %2100 = vmatpush1.bf16.msra.mxu0 %v1592
      %2101 = vmatprep.subr.bf16.mxu0 %v1597
      %2102 = vmatpush1.bf16.msra.mxu0 %v1596
      %2103 = vmatprep.subr.bf16.mxu0 %v1601
      %2104 = vmatpush1.bf16.msra.mxu0 %v1600
      %2105 = vmatprep.subr.bf16.mxu0 %v1605
      %2106 = vmatpush1.bf16.msra.mxu0 %v1604
      %2107 = vmatprep.subr.bf16.mxu0 %v1609
      %2108 = vmatpush1.bf16.msra.mxu0 %v1608
      %2109 = vmatprep.mubr.bf16.mxu0 %v941
      %2110 = vmatmul.mubr.bf16.gmra.mrb[0].mxu0 %v940
      %v2111 = vpop.f32.mrb[0].mxu0
      %v2112 = vadd.f32 %v1999, %v2111
      %v2113 = vpop.f32.mrb[0].mxu0
      %v2114 = vadd.f32 %v2001, %v2113
      %v2115 = vpop.f32.mrb[0].mxu0
      %v2116 = vadd.f32 %v2003, %v2115
      %v2117 = vpop.f32.mrb[0].mxu0
      %v2118 = vadd.f32 %v2005, %v2117
      %2119 = vmatprep.mubr.bf16.mxu0 %v945
      %2120 = vmatmul.mubr.bf16.gmra.mrb[0].mxu0 %v944
      %v2121 = vpop.f32.mrb[0].mxu0
      %v2122 = vadd.f32 %v2009, %v2121
      %v2123 = vpop.f32.mrb[0].mxu0
      %v2124 = vadd.f32 %v2011, %v2123
      %v2125 = vpop.f32.mrb[0].mxu0
      %v2126 = vadd.f32 %v2013, %v2125
      %v2127 = vpop.f32.mrb[0].mxu0
      %v2128 = vadd.f32 %v2015, %v2127
      %2129 = vmatprep.mubr.bf16.mxu0 %v949
      %2130 = vmatmul.mubr.bf16.gmra.mrb[0].mxu0 %v948
      %v2131 = vpop.f32.mrb[0].mxu0
      %v2132 = vadd.f32 %v2019, %v2131
      %v2133 = vpop.f32.mrb[0].mxu0
      %v2134 = vadd.f32 %v2021, %v2133
      %v2135 = vpop.f32.mrb[0].mxu0
      %v2136 = vadd.f32 %v2023, %v2135
      %v2137 = vpop.f32.mrb[0].mxu0
      %v2138 = vadd.f32 %v2025, %v2137
      %2139 = vmatprep.mubr.bf16.mxu0 %v953
      %2140 = vmatmul.mubr.bf16.gmra.mrb[0].mxu0 %v952
      %v2141 = vpop.f32.mrb[0].mxu0
      %v2142 = vadd.f32 %v2029, %v2141
      %v2143 = vpop.f32.mrb[0].mxu0
      %v2144 = vadd.f32 %v2031, %v2143
      %v2145 = vpop.f32.mrb[0].mxu0
      %v2146 = vadd.f32 %v2033, %v2145
      %v2147 = vpop.f32.mrb[0].mxu0
      %v2148 = vadd.f32 %v2035, %v2147
      %2149 = vmatprep.mubr.bf16.mxu0 %v957
      %2150 = vmatmul.mubr.bf16.gmra.mrb[0].mxu0 %v956
      %v2151 = vpop.f32.mrb[0].mxu0
      %v2152 = vadd.f32 %v2039, %v2151
      %v2153 = vpop.f32.mrb[0].mxu0
      %v2154 = vadd.f32 %v2041, %v2153
      %v2155 = vpop.f32.mrb[0].mxu0
      %v2156 = vadd.f32 %v2043, %v2155
      %v2157 = vpop.f32.mrb[0].mxu0
      %v2158 = vadd.f32 %v2045, %v2157
      %2159 = vmatprep.mubr.bf16.mxu0 %v961
      %2160 = vmatmul.mubr.bf16.gmra.mrb[0].mxu0 %v960
      %v2161 = vpop.f32.mrb[0].mxu0
      %v2162 = vadd.f32 %v2049, %v2161
      %v2163 = vpop.f32.mrb[0].mxu0
      %v2164 = vadd.f32 %v2051, %v2163
      %v2165 = vpop.f32.mrb[0].mxu0
      %v2166 = vadd.f32 %v2053, %v2165
      %v2167 = vpop.f32.mrb[0].mxu0
      %v2168 = vadd.f32 %v2055, %v2167
      %2169 = vmatprep.mubr.bf16.mxu0 %v965
      %2170 = vmatmul.mubr.bf16.gmra.mrb[0].mxu0 %v964
      %v2171 = vpop.f32.mrb[0].mxu0
      %v2172 = vadd.f32 %v2059, %v2171
      %v2173 = vpop.f32.mrb[0].mxu0
      %v2174 = vadd.f32 %v2061, %v2173
      %v2175 = vpop.f32.mrb[0].mxu0
      %v2176 = vadd.f32 %v2063, %v2175
      %v2177 = vpop.f32.mrb[0].mxu0
      %v2178 = vadd.f32 %v2065, %v2177
      %2179 = vmatprep.mubr.bf16.mxu0 %v969
      %2180 = vmatmul.mubr.bf16.gmra.mrb[0].mxu0 %v968
      %v2181 = vpop.f32.mrb[0].mxu0
      %v2182 = vadd.f32 %v2069, %v2181
      %v2183 = vpop.f32.mrb[0].mxu0
      %v2184 = vadd.f32 %v2071, %v2183
      %v2185 = vpop.f32.mrb[0].mxu0
      %v2186 = vadd.f32 %v2073, %v2185
      %v2187 = vpop.f32.mrb[0].mxu0
      %v2188 = vadd.f32 %v2075, %v2187
      %2189 = vdwg.mxu0
      %v2190 = vmul.f32 %v1886, %v1886
      %v2191 = vmul.f32 %v1888, %v1888
      %v2192 = vmul.f32 %v1890, %v1890
      %v2193 = vmul.f32 %v1892, %v1892
      %v2194 = vmul.f32 %v1896, %v1896
      %v2195 = vmul.f32 %v1898, %v1898
      %v2196 = vmul.f32 %v1900, %v1900
      %v2197 = vmul.f32 %v1902, %v1902
      %v2198 = vmul.f32 %v1906, %v1906
      %v2199 = vmul.f32 %v1908, %v1908
      %v2200 = vmul.f32 %v1910, %v1910
      %v2201 = vmul.f32 %v1912, %v1912
      %v2202 = vmul.f32 %v1916, %v1916
      %v2203 = vmul.f32 %v1918, %v1918
      %v2204 = vmul.f32 %v1920, %v1920
      %v2205 = vmul.f32 %v1922, %v1922
      %v2206 = vmul.f32 %v1926, %v1926
      %v2207 = vmul.f32 %v1928, %v1928
      %v2208 = vmul.f32 %v1930, %v1930
      %v2209 = vmul.f32 %v1932, %v1932
      %v2210 = vmul.f32 %v1936, %v1936
      %v2211 = vmul.f32 %v1938, %v1938
      %v2212 = vmul.f32 %v1940, %v1940
      %v2213 = vmul.f32 %v1942, %v1942
      %v2214 = vmul.f32 %v1946, %v1946
      %v2215 = vmul.f32 %v1948, %v1948
      %v2216 = vmul.f32 %v1950, %v1950
      %v2217 = vmul.f32 %v1952, %v1952
      %v2218 = vmul.f32 %v1956, %v1956
      %v2219 = vmul.f32 %v1958, %v1958
      %v2220 = vmul.f32 %v1960, %v1960
      %v2221 = vmul.f32 %v1962, %v1962
      %v2222 = vmul.f32 %v2112, %v2112
      %v2223 = vmul.f32 %v2114, %v2114
      %v2224 = vmul.f32 %v2116, %v2116
      %v2225 = vmul.f32 %v2118, %v2118
      %v2226 = vmul.f32 %v2122, %v2122
      %v2227 = vmul.f32 %v2124, %v2124
      %v2228 = vmul.f32 %v2126, %v2126
      %v2229 = vmul.f32 %v2128, %v2128
      %v2230 = vmul.f32 %v2132, %v2132
      %v2231 = vmul.f32 %v2134, %v2134
      %v2232 = vmul.f32 %v2136, %v2136
      %v2233 = vmul.f32 %v2138, %v2138
      %v2234 = vmul.f32 %v2142, %v2142
      %v2235 = vmul.f32 %v2144, %v2144
      %v2236 = vmul.f32 %v2146, %v2146
      %v2237 = vmul.f32 %v2148, %v2148
      %v2238 = vmul.f32 %v2152, %v2152
      %v2239 = vmul.f32 %v2154, %v2154
      %v2240 = vmul.f32 %v2156, %v2156
      %v2241 = vmul.f32 %v2158, %v2158
      %v2242 = vmul.f32 %v2162, %v2162
      %v2243 = vmul.f32 %v2164, %v2164
      %v2244 = vmul.f32 %v2166, %v2166
      %v2245 = vmul.f32 %v2168, %v2168
      %v2246 = vmul.f32 %v2172, %v2172
      %v2247 = vmul.f32 %v2174, %v2174
      %v2248 = vmul.f32 %v2176, %v2176
      %v2249 = vmul.f32 %v2178, %v2178
      %v2250 = vmul.f32 %v2182, %v2182
      %v2251 = vmul.f32 %v2184, %v2184
      %v2252 = vmul.f32 %v2186, %v2186
      %v2253 = vmul.f32 %v2188, %v2188
      %v2254 = vadd.f32 %v2190, %v2222
      %v2255 = vadd.f32 %v2191, %v2223
      %v2256 = vadd.f32 %v2192, %v2224
      %v2257 = vadd.f32 %v2193, %v2225
      %v2258 = vadd.f32 %v2194, %v2226
      %v2259 = vadd.f32 %v2195, %v2227
      %v2260 = vadd.f32 %v2196, %v2228
      %v2261 = vadd.f32 %v2197, %v2229
      %v2262 = vadd.f32 %v2198, %v2230
      %v2263 = vadd.f32 %v2199, %v2231
      %v2264 = vadd.f32 %v2200, %v2232
      %v2265 = vadd.f32 %v2201, %v2233
      %v2266 = vadd.f32 %v2202, %v2234
      %v2267 = vadd.f32 %v2203, %v2235
      %v2268 = vadd.f32 %v2204, %v2236
      %v2269 = vadd.f32 %v2205, %v2237
      %v2270 = vadd.f32 %v2206, %v2238
      %v2271 = vadd.f32 %v2207, %v2239
      %v2272 = vadd.f32 %v2208, %v2240
      %v2273 = vadd.f32 %v2209, %v2241
      %v2274 = vadd.f32 %v2210, %v2242
      %v2275 = vadd.f32 %v2211, %v2243
      %v2276 = vadd.f32 %v2212, %v2244
      %v2277 = vadd.f32 %v2213, %v2245
      %v2278 = vadd.f32 %v2214, %v2246
      %v2279 = vadd.f32 %v2215, %v2247
      %v2280 = vadd.f32 %v2216, %v2248
      %v2281 = vadd.f32 %v2217, %v2249
      %v2282 = vadd.f32 %v2218, %v2250
      %v2283 = vadd.f32 %v2219, %v2251
      %v2284 = vadd.f32 %v2220, %v2252
      %v2285 = vadd.f32 %v2221, %v2253
      %v2286 = vpack.c.bf16 %v2256, %v2254
      %v2287 = vpack.c.bf16 %v2257, %v2255
      %v2288 = vpack.c.bf16 %v2260, %v2258
      %v2289 = vpack.c.bf16 %v2261, %v2259
      %v2290 = vpack.c.bf16 %v2264, %v2262
      %v2291 = vpack.c.bf16 %v2265, %v2263
      %v2292 = vpack.c.bf16 %v2268, %v2266
      %v2293 = vpack.c.bf16 %v2269, %v2267
      %v2294 = vpack.c.bf16 %v2272, %v2270
      %v2295 = vpack.c.bf16 %v2273, %v2271
      %v2296 = vpack.c.bf16 %v2276, %v2274
      %v2297 = vpack.c.bf16 %v2277, %v2275
      %v2298 = vpack.c.bf16 %v2280, %v2278
      %v2299 = vpack.c.bf16 %v2281, %v2279
      %v2300 = vpack.c.bf16 %v2284, %v2282
      %v2301 = vpack.c.bf16 %v2285, %v2283
      %v2302 = vld [vmem:[%s3] sm:$0xf]
      %v2303 = vld [vmem:[%s3 + $0x4] sm:$0xf]
      %v2304 = vld [vmem:[%s3 + $0x8] sm:$0xf]
      %v2305 = vld [vmem:[%s3 + $0xc] sm:$0xf]
      %v2306 = vld [vmem:[%s3 + $0x10] sm:$0xf]
      %v2307 = vld [vmem:[%s3 + $0x14] sm:$0xf]
      %v2308 = vld [vmem:[%s3 + $0x18] sm:$0xf]
      %v2309 = vld [vmem:[%s3 + $0x1c] sm:$0xf]
      %v2310 = vld [vmem:[%s3 + $0x20] sm:$0xf]
      %v2311 = vld [vmem:[%s3 + $0x24] sm:$0xf]
      %v2312 = vld [vmem:[%s3 + $0x28] sm:$0xf]
      %v2313 = vld [vmem:[%s3 + $0x2c] sm:$0xf]
      %v2314 = vld [vmem:[%s3 + $0x30] sm:$0xf]
      %v2315 = vld [vmem:[%s3 + $0x34] sm:$0xf]
      %v2316 = vld [vmem:[%s3 + $0x38] sm:$0xf]
      %v2317 = vld [vmem:[%s3 + $0x3c] sm:$0xf]
      %v2318 = vld [vmem:[%s3 + $0x40] sm:$0xf]
      %v2319 = vld [vmem:[%s3 + $0x44] sm:$0xf]
      %v2320 = vld [vmem:[%s3 + $0x48] sm:$0xf]
      %v2321 = vld [vmem:[%s3 + $0x4c] sm:$0xf]
      %v2322 = vld [vmem:[%s3 + $0x50] sm:$0xf]
      %v2323 = vld [vmem:[%s3 + $0x54] sm:$0xf]
      %v2324 = vld [vmem:[%s3 + $0x58] sm:$0xf]
      %v2325 = vld [vmem:[%s3 + $0x5c] sm:$0xf]
      %v2326 = vld [vmem:[%s3 + $0x60] sm:$0xf]
      %v2327 = vld [vmem:[%s3 + $0x64] sm:$0xf]
      %v2328 = vld [vmem:[%s3 + $0x68] sm:$0xf]
      %v2329 = vld [vmem:[%s3 + $0x6c] sm:$0xf]
      %v2330 = vld [vmem:[%s3 + $0x70] sm:$0xf]
      %v2331 = vld [vmem:[%s3 + $0x74] sm:$0xf]
      %v2332 = vld [vmem:[%s3 + $0x78] sm:$0xf]
      %v2333 = vld [vmem:[%s3 + $0x7c] sm:$0xf]
      %v2366 = vunpack.c.l.b16 %v2302
      %v2367 = vunpack.c.l.b16 %v2303
      %v2368 = vunpack.c.l.b16 %v2304
      %v2369 = vunpack.c.l.b16 %v2305
      %v2370 = vunpack.c.l.b16 %v2306
      %v2371 = vunpack.c.l.b16 %v2307
      %v2372 = vunpack.c.l.b16 %v2308
      %v2373 = vunpack.c.l.b16 %v2309
      %v2374 = vunpack.c.l.b16 %v2310
      %v2375 = vunpack.c.l.b16 %v2311
      %v2376 = vunpack.c.l.b16 %v2312
      %v2377 = vunpack.c.l.b16 %v2313
      %v2378 = vunpack.c.l.b16 %v2314
      %v2379 = vunpack.c.l.b16 %v2315
      %v2380 = vunpack.c.l.b16 %v2316
      %v2381 = vunpack.c.l.b16 %v2317
      %v2382 = vunpack.c.l.b16 %v2318
      %v2383 = vunpack.c.l.b16 %v2319
      %v2384 = vunpack.c.l.b16 %v2320
      %v2385 = vunpack.c.l.b16 %v2321
      %v2386 = vunpack.c.l.b16 %v2322
      %v2387 = vunpack.c.l.b16 %v2323
      %v2388 = vunpack.c.l.b16 %v2324
      %v2389 = vunpack.c.l.b16 %v2325
      %v2390 = vunpack.c.l.b16 %v2326
      %v2391 = vunpack.c.l.b16 %v2327
      %v2392 = vunpack.c.l.b16 %v2328
      %v2393 = vunpack.c.l.b16 %v2329
      %v2394 = vunpack.c.l.b16 %v2330
      %v2395 = vunpack.c.l.b16 %v2331
      %v2396 = vunpack.c.l.b16 %v2332
      %v2397 = vunpack.c.l.b16 %v2333
      %v2398 = vpack.c.b16 %v2367, %v2366
      %v2399 = vpack.c.b16 %v2369, %v2368
      %v2400 = vpack.c.b16 %v2371, %v2370
      %v2401 = vpack.c.b16 %v2373, %v2372
      %v2402 = vpack.c.b16 %v2375, %v2374
      %v2403 = vpack.c.b16 %v2377, %v2376
      %v2404 = vpack.c.b16 %v2379, %v2378
      %v2405 = vpack.c.b16 %v2381, %v2380
      %v2406 = vpack.c.b16 %v2383, %v2382
      %v2407 = vpack.c.b16 %v2385, %v2384
      %v2408 = vpack.c.b16 %v2387, %v2386
      %v2409 = vpack.c.b16 %v2389, %v2388
      %v2410 = vpack.c.b16 %v2391, %v2390
      %v2411 = vpack.c.b16 %v2393, %v2392
      %v2412 = vpack.c.b16 %v2395, %v2394
      %v2413 = vpack.c.b16 %v2397, %v2396
      %2430 = vmatprep.subr.bf16.mxu0 0
      %2431 = vmatpush1.bf16.msra.mxu0 %v2398
      %2432 = vmatprep.subr.bf16.mxu0 0
      %2433 = vmatpush1.bf16.msra.mxu0 %v2399
      %2434 = vmatprep.subr.bf16.mxu0 0
      %2435 = vmatpush1.bf16.msra.mxu0 %v2400
      %2436 = vmatprep.subr.bf16.mxu0 0
      %2437 = vmatpush1.bf16.msra.mxu0 %v2401
      %2438 = vmatprep.subr.bf16.mxu0 0
      %2439 = vmatpush1.bf16.msra.mxu0 %v2402
      %2440 = vmatprep.subr.bf16.mxu0 0
      %2441 = vmatpush1.bf16.msra.mxu0 %v2403
      %2442 = vmatprep.subr.bf16.mxu0 0
      %2443 = vmatpush1.bf16.msra.mxu0 %v2404
      %2444 = vmatprep.subr.bf16.mxu0 0
      %2445 = vmatpush1.bf16.msra.mxu0 %v2405
      %2446 = vmatprep.subr.bf16.mxu0 0
      %2447 = vmatpush1.bf16.msra.mxu0 %v2406
      %2448 = vmatprep.subr.bf16.mxu0 0
      %2449 = vmatpush1.bf16.msra.mxu0 %v2407
      %2450 = vmatprep.subr.bf16.mxu0 0
      %2451 = vmatpush1.bf16.msra.mxu0 %v2408
      %2452 = vmatprep.subr.bf16.mxu0 0
      %2453 = vmatpush1.bf16.msra.mxu0 %v2409
      %2454 = vmatprep.subr.bf16.mxu0 0
      %2455 = vmatpush1.bf16.msra.mxu0 %v2410
      %2456 = vmatprep.subr.bf16.mxu0 0
      %2457 = vmatpush1.bf16.msra.mxu0 %v2411
      %2458 = vmatprep.subr.bf16.mxu0 0
      %2459 = vmatpush1.bf16.msra.mxu0 %v2412
      %2460 = vmatprep.subr.bf16.mxu0 0
      %2461 = vmatpush1.bf16.msra.mxu0 %v2413
      %2462 = vmatprep.mubr.bf16.mxu0 %v2287
      %2463 = vmatmul.mubr.bf16.gmra.mrb[0].mxu0 %v2286
      %v2464 = vpop.f32.mrb[0].mxu0
      %v2465 = vadd.f32 1e-06, %v2464
      %v2466 = vpop.f32.mrb[0].mxu0
      %v2467 = vpop.f32.mrb[0].mxu0
      %v2468 = vadd.f32 1e-06, %v2467
      %v2469 = vpop.f32.mrb[0].mxu0
      %2470 = vmatprep.mubr.bf16.mxu0 %v2289
      %2471 = vmatmul.mubr.bf16.gmra.mrb[0].mxu0 %v2288
      %v2472 = vpop.f32.mrb[0].mxu0
      %v2473 = vadd.f32 1e-06, %v2472
      %v2474 = vpop.f32.mrb[0].mxu0
      %v2475 = vpop.f32.mrb[0].mxu0
      %v2476 = vadd.f32 1e-06, %v2475
      %v2477 = vpop.f32.mrb[0].mxu0
      %2478 = vmatprep.mubr.bf16.mxu0 %v2291
      %2479 = vmatmul.mubr.bf16.gmra.mrb[0].mxu0 %v2290
      %v2480 = vpop.f32.mrb[0].mxu0
      %v2481 = vadd.f32 1e-06, %v2480
      %v2482 = vpop.f32.mrb[0].mxu0
      %v2483 = vpop.f32.mrb[0].mxu0
      %v2484 = vadd.f32 1e-06, %v2483
      %v2485 = vpop.f32.mrb[0].mxu0
      %2486 = vmatprep.mubr.bf16.mxu0 %v2293
      %2487 = vmatmul.mubr.bf16.gmra.mrb[0].mxu0 %v2292
      %v2488 = vpop.f32.mrb[0].mxu0
      %v2489 = vadd.f32 1e-06, %v2488
      %v2490 = vpop.f32.mrb[0].mxu0
      %v2491 = vpop.f32.mrb[0].mxu0
      %v2492 = vadd.f32 1e-06, %v2491
      %v2493 = vpop.f32.mrb[0].mxu0
      %2494 = vmatprep.mubr.bf16.mxu0 %v2295
      %2495 = vmatmul.mubr.bf16.gmra.mrb[0].mxu0 %v2294
      %v2496 = vpop.f32.mrb[0].mxu0
      %v2497 = vadd.f32 1e-06, %v2496
      %v2498 = vpop.f32.mrb[0].mxu0
      %v2499 = vpop.f32.mrb[0].mxu0
      %v2500 = vadd.f32 1e-06, %v2499
      %v2501 = vpop.f32.mrb[0].mxu0
      %2502 = vmatprep.mubr.bf16.mxu0 %v2297
      %2503 = vmatmul.mubr.bf16.gmra.mrb[0].mxu0 %v2296
      %v2504 = vpop.f32.mrb[0].mxu0
      %v2505 = vadd.f32 1e-06, %v2504
      %v2506 = vpop.f32.mrb[0].mxu0
      %v2507 = vpop.f32.mrb[0].mxu0
      %v2508 = vadd.f32 1e-06, %v2507
      %v2509 = vpop.f32.mrb[0].mxu0
      %2510 = vmatprep.mubr.bf16.mxu0 %v2299
      %2511 = vmatmul.mubr.bf16.gmra.mrb[0].mxu0 %v2298
      %v2512 = vpop.f32.mrb[0].mxu0
      %v2513 = vadd.f32 1e-06, %v2512
      %v2514 = vpop.f32.mrb[0].mxu0
      %v2515 = vpop.f32.mrb[0].mxu0
      %v2516 = vadd.f32 1e-06, %v2515
      %v2517 = vpop.f32.mrb[0].mxu0
      %2518 = vmatprep.mubr.bf16.mxu0 %v2301
      %2519 = vmatmul.mubr.bf16.gmra.mrb[0].mxu0 %v2300
      %v2520 = vpop.f32.mrb[0].mxu0
      %v2521 = vadd.f32 1e-06, %v2520
      %v2522 = vpop.f32.mrb[0].mxu0
      %v2523 = vpop.f32.mrb[0].mxu0
      %v2524 = vadd.f32 1e-06, %v2523
      %v2525 = vpop.f32.mrb[0].mxu0
      %2526 = vdwg.mxu0
      %v2527 = vlog2.pop %v2465
      %v2528 = vmul.f32 %v2527, 0.6931472
      %v2529 = vlog2.pop %v2468
      %v2530 = vmul.f32 %v2529, 0.6931472
      %v2531 = vlog2.pop %v2473
      %v2532 = vmul.f32 %v2531, 0.6931472
      %v2533 = vlog2.pop %v2476
      %v2534 = vmul.f32 %v2533, 0.6931472
      %v2535 = vlog2.pop %v2481
      %v2536 = vmul.f32 %v2535, 0.6931472
      %v2537 = vlog2.pop %v2484
      %v2538 = vmul.f32 %v2537, 0.6931472
      %v2539 = vlog2.pop %v2489
      %v2540 = vmul.f32 %v2539, 0.6931472
      %v2541 = vlog2.pop %v2492
      %v2542 = vmul.f32 %v2541, 0.6931472
      %v2543 = vlog2.pop %v2497
      %v2544 = vmul.f32 %v2543, 0.6931472
      %v2545 = vlog2.pop %v2500
      %v2546 = vmul.f32 %v2545, 0.6931472
      %v2547 = vlog2.pop %v2505
      %v2548 = vmul.f32 %v2547, 0.6931472
      %v2549 = vlog2.pop %v2508
      %v2550 = vmul.f32 %v2549, 0.6931472
      %v2551 = vlog2.pop %v2513
      %v2552 = vmul.f32 %v2551, 0.6931472
      %v2553 = vlog2.pop %v2516
      %v2554 = vmul.f32 %v2553, 0.6931472
      %v2555 = vlog2.pop %v2521
      %v2556 = vmul.f32 %v2555, 0.6931472
      %v2557 = vlog2.pop %v2524
      %v2558 = vmul.f32 %v2557, 0.6931472
      %2559 = vxpose.xlu0.b32.start [1/16] %v2528, 128
      %2560 = vxpose.xlu0.b32.cont [2/16] %v2530, 128
      %2561 = vxpose.xlu0.b32.cont [3/16] %v2532, 128
      %2562 = vxpose.xlu0.b32.cont [4/16] %v2534, 128
      %2563 = vxpose.xlu0.b32.cont [5/16] %v2536, 128
      %2564 = vxpose.xlu0.b32.cont [6/16] %v2538, 128
      %2565 = vxpose.xlu0.b32.cont [7/16] %v2540, 128
      %2566 = vxpose.xlu0.b32.cont [8/16] %v2542, 128
      %2567 = vxpose.xlu0.b32.cont [9/16] %v2544, 128
      %2568 = vxpose.xlu0.b32.cont [10/16] %v2546, 128
      %2569 = vxpose.xlu0.b32.cont [11/16] %v2548, 128
      %2570 = vxpose.xlu0.b32.cont [12/16] %v2550, 128
      %2571 = vxpose.xlu0.b32.cont [13/16] %v2552, 128
      %2572 = vxpose.xlu0.b32.cont [14/16] %v2554, 128
      %2573 = vxpose.xlu0.b32.cont [15/16] %v2556, 128
      %2574 = vxpose.xlu0.b32.end [16/16] %v2558, 128
      %v2575 = vpop.trf.xlu0
      %v2576 = vpop.trf.xlu0
      %v2577 = vpop.trf.xlu0
      %v2578 = vpop.trf.xlu0
      %v2579 = vpop.trf.xlu0
      %v2580 = vpop.trf.xlu0
      %v2581 = vpop.trf.xlu0
      %v2582 = vpop.trf.xlu0
      %v2583 = vpop.trf.xlu0
      %v2584 = vpop.trf.xlu0
      %v2585 = vpop.trf.xlu0
      %v2586 = vpop.trf.xlu0
      %v2587 = vpop.trf.xlu0
      %v2588 = vpop.trf.xlu0
      %v2589 = vpop.trf.xlu0
      %v2590 = vpop.trf.xlu0
      %2591 = vst [vmem:[%s353] sm:$0xff] %v2575
      %2592 = vst [vmem:[%s353 + $0x8] sm:$0xff] %v2576
      %2593 = vst [vmem:[%s353 + $0x10] sm:$0xff] %v2577
      %2594 = vst [vmem:[%s353 + $0x18] sm:$0xff] %v2578
      %2595 = vst [vmem:[%s353 + $0x20] sm:$0xff] %v2579
      %2596 = vst [vmem:[%s353 + $0x28] sm:$0xff] %v2580
      %2597 = vst [vmem:[%s353 + $0x30] sm:$0xff] %v2581
      %2598 = vst [vmem:[%s353 + $0x38] sm:$0xff] %v2582
      %2599 = vst [vmem:[%s353 + $0x40] sm:$0xff] %v2583
      %2600 = vst [vmem:[%s353 + $0x48] sm:$0xff] %v2584
      %2601 = vst [vmem:[%s353 + $0x50] sm:$0xff] %v2585
      %2602 = vst [vmem:[%s353 + $0x58] sm:$0xff] %v2586
      %2603 = vst [vmem:[%s353 + $0x60] sm:$0xff] %v2587
      %2604 = vst [vmem:[%s353 + $0x68] sm:$0xff] %v2588
      %2605 = vst [vmem:[%s353 + $0x70] sm:$0xff] %v2589
      %2606 = vst [vmem:[%s353 + $0x78] sm:$0xff] %v2590
      %v2607 = vlaneseq
      %v2608 = vshrl.u32 %v2607, 7
      %v2609 = vadd.s32 %v2608, 8
      %v2610 = vadd.s32 %v2608, 16
      %v2611 = vadd.s32 %v2608, 24
      %v2612 = vadd.s32 %v2608, 32
      %v2613 = vadd.s32 %v2608, 40
      %v2614 = vadd.s32 %v2608, 48
      %v2615 = vadd.s32 %v2608, 56
      %v2616 = vadd.s32 %v2608, 64
      %v2617 = vadd.s32 %v2608, 72
      %v2618 = vadd.s32 %v2608, 80
      %v2619 = vadd.s32 %v2608, 88
      %v2620 = vadd.s32 %v2608, 96
      %v2621 = vadd.s32 %v2608, 104
      %v2622 = vadd.s32 %v2608, 112
      %v2623 = vadd.s32 %v2608, 120
      %s2624 = smul.u32 %s22, 128
      %v2625 = vstv %s2624
      %v2626 = vadd.s32 %v2608, %v2625
      %v2627 = vadd.s32 %v2609, %v2625
      %v2628 = vadd.s32 %v2610, %v2625
      %v2629 = vadd.s32 %v2611, %v2625
      %v2630 = vadd.s32 %v2612, %v2625
      %v2631 = vadd.s32 %v2613, %v2625
      %v2632 = vadd.s32 %v2614, %v2625
      %v2633 = vadd.s32 %v2615, %v2625
      %v2634 = vadd.s32 %v2616, %v2625
      %v2635 = vadd.s32 %v2617, %v2625
      %v2636 = vadd.s32 %v2618, %v2625
      %v2637 = vadd.s32 %v2619, %v2625
      %v2638 = vadd.s32 %v2620, %v2625
      %v2639 = vadd.s32 %v2621, %v2625
      %v2640 = vadd.s32 %v2622, %v2625
      %v2641 = vadd.s32 %v2623, %v2625
      %vm2642 = vcmp.lt.s32.totalorder %v2626, 11
      %vm2643 = vcmp.lt.s32.totalorder %v2627, 11
      %vm2644 = vcmp.lt.s32.totalorder %v2628, 11
      %vm2645 = vcmp.lt.s32.totalorder %v2629, 11
      %vm2646 = vcmp.lt.s32.totalorder %v2630, 11
      %vm2647 = vcmp.lt.s32.totalorder %v2631, 11
      %vm2648 = vcmp.lt.s32.totalorder %v2632, 11
      %vm2649 = vcmp.lt.s32.totalorder %v2633, 11
      %vm2650 = vcmp.lt.s32.totalorder %v2634, 11
      %vm2651 = vcmp.lt.s32.totalorder %v2635, 11
      %vm2652 = vcmp.lt.s32.totalorder %v2636, 11
      %vm2653 = vcmp.lt.s32.totalorder %v2637, 11
      %vm2654 = vcmp.lt.s32.totalorder %v2638, 11
      %vm2655 = vcmp.lt.s32.totalorder %v2639, 11
      %vm2656 = vcmp.lt.s32.totalorder %v2640, 11
      %vm2657 = vcmp.lt.s32.totalorder %v2641, 11
      %v2658 = vsel %vm2642, %v2528, 0.0
      %v2659 = vsel %vm2643, %v2530, 0.0
      %v2660 = vsel %vm2644, %v2532, 0.0
      %v2661 = vsel %vm2645, %v2534, 0.0
      %v2662 = vsel %vm2646, %v2536, 0.0
      %v2663 = vsel %vm2647, %v2538, 0.0
      %v2664 = vsel %vm2648, %v2540, 0.0
      %v2665 = vsel %vm2649, %v2542, 0.0
      %v2666 = vsel %vm2650, %v2544, 0.0
      %v2667 = vsel %vm2651, %v2546, 0.0
      %v2668 = vsel %vm2652, %v2548, 0.0
      %v2669 = vsel %vm2653, %v2550, 0.0
      %v2670 = vsel %vm2654, %v2552, 0.0
      %v2671 = vsel %vm2655, %v2554, 0.0
      %v2672 = vsel %vm2656, %v2556, 0.0
      %v2673 = vsel %vm2657, %v2558, 0.0
      %v2674 = vadd.f32 %v2658, %v2659
      %v2675 = vadd.f32 %v2674, %v2660
      %v2676 = vadd.f32 %v2675, %v2661
      %v2677 = vadd.f32 %v2676, %v2662
      %v2678 = vadd.f32 %v2677, %v2663
      %v2679 = vadd.f32 %v2678, %v2664
      %v2680 = vadd.f32 %v2679, %v2665
      %v2681 = vadd.f32 %v2680, %v2666
      %v2682 = vadd.f32 %v2681, %v2667
      %v2683 = vadd.f32 %v2682, %v2668
      %v2684 = vadd.f32 %v2683, %v2669
      %v2685 = vadd.f32 %v2684, %v2670
      %v2686 = vadd.f32 %v2685, %v2671
      %v2687 = vadd.f32 %v2686, %v2672
      %v2688 = vadd.f32 %v2687, %v2673
      %v2689 = vrot.slane %v2688, 4
      %v2690 = vadd.f32 %v2688, %v2689
      %v2691 = vrot.slane %v2690, 2
      %v2692 = vadd.f32 %v2690, %v2691
      %v2693 = vrot.slane %v2692, 1
      %v2694 = vadd.f32 %v2692, %v2693
      %2695 = vst [vmem:[%s360] sm:$0xff] %v2694
      %p2696 = scmp.lt.s32.totalorder %s21, 1
      %s2697 = scalar_select %p2696, %s21, 1
      %p2698 = scmp.lt.s32.totalorder %s22, 0
      %s2699 = scalar_select %p2698, %s22, 0
      %s2700 = smul.addr %s2697, 16
      %s2701 = sadd.s32 %s2699, %s2700
      %s2702 = smul.addr %s2701, 8
      %s2703 = scalar_lea.vmem %s4, %s2702
      %p2704 = scmp.lt.s32.totalorder %s21, 1
      %s2705 = scalar_select %p2704, %s21, 1
      %p2706 = scmp.lt.s32.totalorder %s22, 0
      %s2707 = scalar_select %p2706, %s22, 0
      %s2708 = sadd.s32 %s2707, %s2705
      %s2709 = smul.addr %s2708, 8
      %s2710 = scalar_lea.vmem %s5, %s2709
      // Predicated region
      $region37: #{mel_feat_calculator.3} parent=35 // pred_check
        %p2711 = pneg %p151
      $region38: #{mel_feat_calculator.3} parent=35 // pred_check_branch
        %2713 = sbr.rel (%p2711) target = $region40
      $region39: #{mel_feat_calculator.3} parent=35 // pred_region
        _
      $region40: #{mel_feat_calculator.3} parent=35 // pred_fallthru
        _
      // Predicated region
      $region41: #{mel_feat_calculator.3} parent=35 // pred_check
        %p2714 = pneg %p179
      $region42: #{mel_feat_calculator.3} parent=35 // pred_check_branch
        %2716 = sbr.rel (%p2714) target = $region44
      $region43: #{mel_feat_calculator.3} parent=35 // pred_region
        _
      $region44: #{mel_feat_calculator.3} parent=35 // pred_fallthru
        _
    $region36: #{mel_feat_calculator.3} parent=5 // pred_fallthru
      _
    %p2717 = scmp.le.s32.totalorder 2, %s12
    // Predicated region
    $region45: #{mel_feat_calculator.3} parent=5 // pred_check
      %p2718 = pneg %p2717
    $region46: #{mel_feat_calculator.3} parent=5 // pred_check_branch
      %2720 = sbr.rel (%p2718) target = $region48
    $region47: #{mel_feat_calculator.3} parent=5 // pred_region
      %s2721 = ssub.s32 %s12, 2
      // Predicated region
      $region49: #{mel_feat_calculator.3} parent=47 // pred_check
        %p2722 = pneg %p157
      $region50: #{mel_feat_calculator.3} parent=47 // pred_check_branch
        %2724 = sbr.rel (%p2722) target = $region52
      $region51: #{mel_feat_calculator.3} parent=47 // pred_region
        %p2725 = scmp.lt.s32.totalorder %s23, 1
        %s2726 = scalar_select %p2725, %s23, 1
        %p2727 = scmp.lt.s32.totalorder %s24, 0
        %s2728 = scalar_select %p2727, %s24, 0
        %s2729 = smul.addr %s2726, 16
        %s2730 = sadd.s32 %s2728, %s2729
        %s2731 = smul.addr %s2730, 8
        %s2732 = scalar_lea.vmem %s4, %s2731
      $region52: #{mel_feat_calculator.3} parent=47 // pred_fallthru
        _
      // Predicated region
      $region53: #{mel_feat_calculator.3} parent=47 // pred_check
        %p2733 = pneg %p185
      $region54: #{mel_feat_calculator.3} parent=47 // pred_check_branch
        %2735 = sbr.rel (%p2733) target = $region56
      $region55: #{mel_feat_calculator.3} parent=47 // pred_region
        %p2736 = scmp.lt.s32.totalorder %s23, 1
        %s2737 = scalar_select %p2736, %s23, 1
        %p2738 = scmp.lt.s32.totalorder %s24, 0
        %s2739 = scalar_select %p2738, %s24, 0
        %s2740 = sadd.s32 %s2739, %s2737
        %s2741 = smul.addr %s2740, 8
        %s2742 = scalar_lea.vmem %s5, %s2741
      $region56: #{mel_feat_calculator.3} parent=47 // pred_fallthru
        _
    $region48: #{mel_feat_calculator.3} parent=5 // pred_fallthru
      _
  $region6: #{mel_feat_calculator.3} parent=0 // loop_footer
    %s16 = sadd.s32 1, %s12
  $region7: #{mel_feat_calculator.3} parent=0 // loop_footer_branch
    %11 = sbr.rel target = $region3
  $region8: #{mel_feat_calculator.3} parent=0 // loop_exit
    _

</llo_original>
